<compile_context>
chip_gen: v7x
topology: tpu7x:2x2x1
jax: 0.10.0
libtpu: 0.0.40
codegen_flags: <defaults>
</compile_context>

<pallas_src>
import functools

import jax
import jax.numpy as jnp
from jax import lax
from jax.experimental import pallas as pl
from jax.experimental.pallas import tpu as pltpu


def _default_vmem_limit():
    # Leave headroom for compiler scratch / double buffers (esp. v7x: 64 MiB).
    try:
        cap = int(pltpu.get_tpu_info().vmem_capacity_bytes)
        return min(64 * 1024 * 1024, (cap * 3) // 4)
    except Exception:  # pragma: no cover - conservative fallback
        return 48 * 1024 * 1024


_VMEM_LIMIT = _default_vmem_limit()
_POOL_BLOCK_ELEMS = 512 * 1024  # per-block element budget for the pool kernel


def _largest_divisor_leq(n, target, prefer_multiple_of=None):
    """Largest divisor of n that is <= target (preferring multiples of k)."""
    target = max(1, min(n, target))
    if prefer_multiple_of is not None:
        d = (target // prefer_multiple_of) * prefer_multiple_of
        while d >= prefer_multiple_of:
            if n % d == 0:
                return d
            d -= prefer_multiple_of
    d = target
    while d > 1:
        if n % d == 0:
            return d
        d -= 1
    return 1
    # TODO(synk): for pathological (prime) N*H*W, mask the ragged tail in-kernel
    #             instead of falling back to tiny tiles.


# ----------------------------------------------------------------------------
# Kernel 1: fused 1x1 conv (split-K over branches) + folded-BN bias + SiLU
#           NCHW in -> NCHW out, canonical (Cout,Cin) @ (Cin,TP) MXU matmuls.
# ----------------------------------------------------------------------------
def _make_conv1x1_kernel(n_in, approx_silu):
    def kernel(*refs):
        # refs = x_0..x_{n-1} (1,Cin_i,TP), w_0..w_{n-1} (Cout,Cin_i),
        #        bias (Cout,1), out (1,Cout,TP)
        xs = refs[:n_in]
        ws = refs[n_in:2 * n_in]
        b_ref = refs[2 * n_in]
        o_ref = refs[2 * n_in + 1]

        acc = None
        for x_ref, w_ref in zip(xs, ws):
            xv = x_ref[0]                                   # (Cin_i, TP)
            if xv.dtype != w_ref.dtype:                     # only cv1's f32 input
                xv = xv.astype(w_ref.dtype)
            part = jnp.dot(w_ref[...], xv,
                           preferred_element_type=jnp.float32)
            acc = part if acc is None else acc + part

        y = acc + b_ref[...]                                # (Cout,TP) + (Cout,1)
        if approx_silu:
            # SiLU: y * sigmoid(y) = y / (1 + exp(-y)); reciprocal on the EUP.
            act = y * pl.reciprocal(1.0 + jnp.exp(-y), approx=True)
        else:
            act = y * jax.nn.sigmoid(y)
        o_ref[0] = act.astype(o_ref.dtype)

    return kernel


def conv1x1_bias_silu(xs, ws, bias, *, out_dtype, tile_p=512):
    """sum_i (w_i @ x_i) + bias -> SiLU, all arrays NCHW-flat.

    xs : list of (N, Cin_i, P)   ws : list of (Cout, Cin_i), pre-folded/pre-cast
    bias : (Cout, 1) f32.  Spatial tile is a divisor of P (no pad / tail slice).
    NOTE: tile_p up to 1024 is worth sweeping on v5e/v6e; keep <=512 on v7x.
    """
    assert len(xs) == len(ws)
    n_in = len(xs)
    N, _, P = xs[0].shape
    cout = ws[0].shape[0]
    tp = _largest_divisor_leq(P, tile_p, prefer_multiple_of=128)

    in_specs = []
    for xv in xs:
        cin = xv.shape[1]
        in_specs.append(pl.BlockSpec((1, cin, tp), lambda n, p: (n, 0, p)))
    for wv in ws:
        in_specs.append(pl.BlockSpec(wv.shape, lambda n, p: (0, 0)))
    in_specs.append(pl.BlockSpec(bias.shape, lambda n, p: (0, 0)))

    approx = ws[0].dtype != jnp.float32
    return pl.pallas_call(
        _make_conv1x1_kernel(n_in, approx),
        out_shape=jax.ShapeDtypeStruct((N, cout, P), out_dtype),
        grid_spec=pltpu.PrefetchScalarGridSpec(
            num_scalar_prefetch=0,
            grid=(N, P // tp),
            in_specs=in_specs,
            out_specs=pl.BlockSpec((1, cout, tp), lambda n, p: (n, 0, p)),
        ),
        compiler_params=pltpu.CompilerParams(
            dimension_semantics=("parallel", "parallel"),
            vmem_limit_bytes=_VMEM_LIMIT),
    )(*xs, *ws, bias)


# ----------------------------------------------------------------------------
# Kernel 2: three chained 5x5/s1/p2 max pools fused, channel-tiled NCHW blocks
# ----------------------------------------------------------------------------
def _pool3_kernel(x_ref, y1_ref, y2_ref, y3_ref, pad_ref):
    # x_ref / y*_ref: (1, TC, H, W) blocks.  pad_ref: (TC, H+16, W+16) scratch;
    # the interior starts at (row 8, col 8) -> 8-aligned sublane offset.
    _, tc, H, W = x_ref.shape
    hp = H + 16
    wp = W + 16
    dt = pad_ref.dtype

    # Halo-only -inf init; interior written exactly once by the copy below.
    pad_ref[:, 0:8, :] = jnp.full((tc, 8, wp), -jnp.inf, dt)
    pad_ref[:, 8 + H:hp, :] = jnp.full((tc, 8, wp), -jnp.inf, dt)
    pad_ref[:, 8:8 + H, 0:8] = jnp.full((tc, H, 8), -jnp.inf, dt)
    pad_ref[:, 8:8 + H, 8 + W:wp] = jnp.full((tc, H, 8), -jnp.inf, dt)
    pad_ref[:, 8:8 + H, 8:8 + W] = x_ref[0]

    def rmax5(a, axis, n):
        # Anchored 5-tap running max along `axis` (1=H rows, 2=W cols),
        # output extent n.  Log-trick: 3 shifted slices / 3 maxima.
        def sl(v, s, m):
            return v[:, s:s + m, :] if axis == 1 else v[:, :, s:s + m]
        t1 = jnp.maximum(sl(a, 0, n + 2), sl(a, 1, n + 2))   # window 2
        t2 = jnp.maximum(sl(t1, 0, n), sl(t1, 2, n))         # window 4
        return jnp.maximum(t2, sl(a, 4, n))                  # window 5

    def pool5(a, oh, ow):
        return rmax5(rmax5(a, 1, oh), 2, ow)

    # Chained pools on -inf-extended tiles; each y_k is stored as soon as it is
    # available to cap the live set.
    p1 = pool5(pad_ref[...], H + 12, W + 12)   # y1 over x coords [-6, H+6)
    y1_ref[0] = p1[:, 6:6 + H, 6:6 + W]
    p2 = pool5(p1, H + 8, W + 8)               # y2 over x coords [-4, H+4)
    y2_ref[0] = p2[:, 4:4 + H, 4:4 + W]
    p3 = pool5(p2, H + 4, W + 4)               # y3 over x coords [-2, H+2)
    y3_ref[0] = p3[:, 2:2 + H, 2:2 + W]


def maxpool5_x3(x):
    """x: (N, C, H, W) -> (y1, y2, y3), three chained 5x5/s1/p2 max pools."""
    N, C, H, W = x.shape
    budget = max(1, _POOL_BLOCK_ELEMS // ((H + 16) * (W + 16)))
    tc = _largest_divisor_leq(C, budget)

    out_sds = jax.ShapeDtypeStruct(x.shape, x.dtype)
    io = pl.BlockSpec((1, tc, H, W), lambda n, c: (n, c, 0, 0))
    return pl.pallas_call(
        _pool3_kernel,
        out_shape=(out_sds, out_sds, out_sds),
        grid_spec=pltpu.PrefetchScalarGridSpec(
            num_scalar_prefetch=0,
            grid=(N, C // tc),
            in_specs=[io],
            out_specs=[io, io, io],
            scratch_shapes=[pltpu.VMEM((tc, H + 16, W + 16), x.dtype)],
        ),
        compiler_params=pltpu.CompilerParams(
            dimension_semantics=("parallel", "parallel"),
            vmem_limit_bytes=_VMEM_LIMIT),
    )(x)


# ----------------------------------------------------------------------------
# SPPF forward (wrapper) -- NCHW end to end, no boundary transposes
# ----------------------------------------------------------------------------
@jax.jit
def sppf_forward(x_nchw, params):
    N, c1, H, W = x_nchw.shape
    P = H * W
    c_ = params["w1t"].shape[0]
    c2 = params["w2t_split"][0].shape[0]
    inter_dtype = params["w1t"].dtype   # bf16 by default (storage + MXU operands)

    # cv1 (BN folded into w1t); output stored in inter_dtype.
    x_ = conv1x1_bias_silu([x_nchw.reshape(N, c1, P)], [params["w1t"]],
                           params["b1"], out_dtype=inter_dtype)      # (N, c_, P)

    # fused chain of three 5x5 max pools (exact in bf16).
    y1, y2, y3 = maxpool5_x3(x_.reshape(N, c_, H, W))

    # cv2 without materializing the channel concat: split-K accumulation over
    # (x_, y1, y2, y3) against the 4 pre-split K-slices of folded w2.
    flat = lambda t: t.reshape(N, c_, P)
    out = conv1x1_bias_silu([x_, flat(y1), flat(y2), flat(y3)],
                            list(params["w2t_split"]), params["b2"],
                            out_dtype=x_nchw.dtype)                  # (N, c2, P)
    return out.reshape(N, c2, H, W)


# ----------------------------------------------------------------------------
# Pure-JAX reference (un-folded conv -> BN -> SiLU, reduce_window pools), NCHW
# ----------------------------------------------------------------------------
def sppf_reference(x_nchw, raw):
    def conv(t, w, s, b):
        y = jnp.einsum("nchw,cd->ndhw", t, w)
        y = y * s.reshape(1, -1, 1, 1) + b.reshape(1, -1, 1, 1)
        return y * jax.nn.sigmoid(y)

    def pool(t):
        return lax.reduce_window(t, -jnp.inf, lax.max,
                                 (1, 1, 5, 5), (1, 1, 1, 1),
                                 ((0, 0), (0, 0), (2, 2), (2, 2)))

    x_ = conv(x_nchw, raw["w1"], raw["s1"], raw["b1"])
    y1 = pool(x_)
    y2 = pool(y1)
    y3 = pool(y2)
    cat = jnp.concatenate([x_, y1, y2, y3], axis=1)
    return conv(cat, raw["w2"], raw["s2"], raw["b2"])


# ----------------------------------------------------------------------------
# Deterministic parameters: raw Conv2d weights + BatchNorm stats, then folding
# ----------------------------------------------------------------------------
def make_raw_params(c1, c2, key):
    c_ = c1 // 2
    eps = 1e-5
    ks = jax.random.split(key, 10)

    def bn(kg, kb, km, kv, c):
        gamma = 1.0 + 0.1 * jax.random.normal(kg, (c,), jnp.float32)
        beta = 0.1 * jax.random.normal(kb, (c,), jnp.float32)
        mean = 0.1 * jax.random.normal(km, (c,), jnp.float32)
        var = jnp.abs(jax.random.normal(kv, (c,), jnp.float32)) + 0.5
        s = gamma / jnp.sqrt(var + eps)
        b = beta - mean * s
        return s, b

    w1 = 0.2 * jax.random.normal(ks[0], (c1, c_), jnp.float32)     # (Cin, Cout)
    s1, b1 = bn(ks[1], ks[2], ks[3], ks[4], c_)
    w2 = 0.2 * jax.random.normal(ks[5], (4 * c_, c2), jnp.float32)
    s2, b2 = bn(ks[6], ks[7], ks[8], ks[9], c2)
    return {"w1": w1, "s1": s1, "b1": b1, "w2": w2, "s2": s2, "b2": b2}


def fold_params(raw, compute_dtype=jnp.bfloat16):
    """Fold BN scale into conv weights, transpose to (Cout, Cin), pre-cast to
    the MXU operand dtype, and split w2 into the 4 per-branch K-slices."""
    c_ = raw["w1"].shape[1]
    w1f = raw["w1"] * raw["s1"][None, :]                    # (c1, c_)
    w2f = raw["w2"] * raw["s2"][None, :]                    # (4c_, c2)
    w1t = jnp.asarray(w1f.T, dtype=compute_dtype)           # (c_, c1)
    w2t_split = tuple(
        jnp.asarray(w2f[i * c_:(i + 1) * c_].T, dtype=compute_dtype)  # (c2, c_)
        for i in range(4))
    return {"w1t": w1t, "b1": raw["b1"].reshape(-1, 1),
            "w2t_split": w2t_split, "b2": raw["b2"].reshape(-1, 1)}


if __name__ == "__main__":
    key = jax.random.PRNGKey(0)
    k_x, k_p = jax.random.split(key)

    c1, c2 = 4, 8
    N, H, W = 2, 16, 16
    x = jax.random.normal(k_x, (N, c1, H, W), jnp.float32)   # NCHW input
    raw = make_raw_params(c1, c2, k_p)
    ref = jax.block_until_ready(sppf_reference(x, raw))

    # Exact f32 path (validates kernel structure tightly).
    params_f32 = fold_params(raw, compute_dtype=jnp.float32)
    out_f32 = jax.block_until_ready(sppf_forward(x, params_f32))
    assert out_f32.shape == (N, c2, H, W)
    assert jnp.allclose(out_f32, ref, rtol=1e-4, atol=1e-5), \
        float(jnp.max(jnp.abs(out_f32 - ref)))

    # Default production path: bf16 intermediates + bf16 MXU operands (f32 acc).
    params_bf16 = fold_params(raw)
    out_bf16 = jax.block_until_ready(sppf_forward(x, params_bf16))
    assert out_bf16.shape == (N, c2, H, W)
    assert jnp.allclose(out_bf16, ref, rtol=5e-2, atol=5e-2), \
        float(jnp.max(jnp.abs(out_bf16 - ref)))

    print("KERNEL_OK")
</pallas_src>

<mosaic_0001>
module attributes {stable_mosaic.version = 11 : i64} {
  func.func @kernel(%arg0: i32, %arg1: i32, %arg2: memref<1x4x256xf32, #tpu.memory_space<vmem>>, %arg3: memref<2x4xf32, #tpu.memory_space<vmem>>, %arg4: memref<2x1xf32, #tpu.memory_space<vmem>>, %arg5: memref<1x2x256xf32, #tpu.memory_space<vmem>>) attributes {dimension_semantics = [#tpu.dimension_semantics<parallel>, #tpu.dimension_semantics<parallel>], iteration_bounds = array<i64: 2, 1>, scalar_prefetch = 0 : i64, scratch_operands = 0 : i64, tpu.core_type = #tpu.core_type<tc>, window_params = [{transform_indices = @transform_0, window_bounds = array<i64: 1, 4, 256>}, {pipeline_mode = #tpu.pipeline_mode<synchronous>, transform_indices = @transform_1, window_bounds = array<i64: 2, 4>}, {pipeline_mode = #tpu.pipeline_mode<synchronous>, transform_indices = @transform_2, window_bounds = array<i64: 2, 1>}, {transform_indices = @transform_3, window_bounds = array<i64: 1, 2, 256>}]} {
    %c0 = arith.constant 0 : index
    %c0_0 = arith.constant 0 : index
    %c0_1 = arith.constant 0 : index
    %0 = vector.load %arg2[%c0, %c0_0, %c0_1] : memref<1x4x256xf32, #tpu.memory_space<vmem>>, vector<1x4x256xf32>
    %1 = vector.shape_cast %0 : vector<1x4x256xf32> to vector<4x256xf32>
    %c0_2 = arith.constant 0 : index
    %c0_3 = arith.constant 0 : index
    %2 = vector.load %arg3[%c0_2, %c0_3] : memref<2x4xf32, #tpu.memory_space<vmem>>, vector<2x4xf32>
    %cst = arith.constant dense<0.000000e+00> : vector<2x256xf32>
    %3 = tpu.matmul %2, %1, %cst {dimension_numbers = #tpu.dot_dimension_numbers<[1], [0], [0], [1], [0, 0, 1, 1], [], []>} : vector<2x4xf32>, vector<4x256xf32>, vector<2x256xf32> -> vector<2x256xf32>
    %c0_4 = arith.constant 0 : index
    %c0_5 = arith.constant 0 : index
    %4 = vector.load %arg4[%c0_4, %c0_5] : memref<2x1xf32, #tpu.memory_space<vmem>>, vector<2x1xf32>
    %5 = vector.broadcast %4 : vector<2x1xf32> to vector<2x256xf32>
    %6 = arith.addf %3, %5 : vector<2x256xf32>
    %7 = arith.negf %6 : vector<2x256xf32>
    %8 = math.exp %7 : vector<2x256xf32>
    %cst_6 = arith.constant 1.000000e+00 : f32
    %9 = vector.broadcast %cst_6 : f32 to vector<2x256xf32>
    %10 = arith.addf %9, %8 : vector<2x256xf32>
    %11 = arith.divf %9, %10 : vector<2x256xf32>
    %12 = arith.mulf %6, %11 : vector<2x256xf32>
    %c0_7 = arith.constant 0 : index
    %c0_8 = arith.constant 0 : index
    %c0_9 = arith.constant 0 : index
    %13 = vector.load %arg5[%c0_7, %c0_8, %c0_9] : memref<1x2x256xf32, #tpu.memory_space<vmem>>, vector<1x2x256xf32>
    %14 = vector.shape_cast %13 : vector<1x2x256xf32> to vector<2x256xf32>
    %15 = vector.shape_cast %12 : vector<2x256xf32> to vector<1x2x256xf32>
    tpu.vector_store %arg5[%c0_7, %c0_8, %c0_9], %15 {strides = array<i32>} : memref<1x2x256xf32, #tpu.memory_space<vmem>>, vector<1x2x256xf32>,
    return
  }
  func.func @transform_0(%arg0: i32, %arg1: i32) -> (i32, i32, i32) {
    %c0_i32 = arith.constant 0 : i32
    %c0_i32_0 = arith.constant 0 : i32
    return %arg0, %c0_i32, %arg1 : i32, i32, i32
  }
  func.func @transform_1(%arg0: i32, %arg1: i32) -> (i32, i32) {
    %c0_i32 = arith.constant 0 : i32
    %c0_i32_0 = arith.constant 0 : i32
    %c0_i32_1 = arith.constant 0 : i32
    return %c0_i32, %c0_i32_0 : i32, i32
  }
  func.func @transform_2(%arg0: i32, %arg1: i32) -> (i32, i32) {
    %c0_i32 = arith.constant 0 : i32
    %c0_i32_0 = arith.constant 0 : i32
    %c0_i32_1 = arith.constant 0 : i32
    return %c0_i32, %c0_i32_0 : i32, i32
  }
  func.func @transform_3(%arg0: i32, %arg1: i32) -> (i32, i32, i32) {
    %c0_i32 = arith.constant 0 : i32
    %c0_i32_0 = arith.constant 0 : i32
    return %arg0, %c0_i32, %arg1 : i32, i32, i32
  }
}

module attributes {stable_mosaic.version = 11 : i64} {
  func.func @_pool3_kernel(%arg0: i32, %arg1: i32, %arg2: memref<1x2x16x16xf32, #tpu.memory_space<vmem>>, %arg3: memref<1x2x16x16xf32, #tpu.memory_space<vmem>>, %arg4: memref<1x2x16x16xf32, #tpu.memory_space<vmem>>, %arg5: memref<1x2x16x16xf32, #tpu.memory_space<vmem>>, %arg6: memref<2x32x32xf32, #tpu.memory_space<vmem>>) attributes {dimension_semantics = [#tpu.dimension_semantics<parallel>, #tpu.dimension_semantics<parallel>], iteration_bounds = array<i64: 2, 1>, scalar_prefetch = 0 : i64, scratch_operands = 1 : i64, tpu.core_type = #tpu.core_type<tc>, window_params = [{transform_indices = @transform_0, window_bounds = array<i64: 1, 2, 16, 16>}, {transform_indices = @transform_1, window_bounds = array<i64: 1, 2, 16, 16>}, {transform_indices = @transform_2, window_bounds = array<i64: 1, 2, 16, 16>}, {transform_indices = @transform_3, window_bounds = array<i64: 1, 2, 16, 16>}]} {
    %cst = arith.constant 0xFF800000 : f32
    %0 = vector.broadcast %cst : f32 to vector<2x8x32xf32>
    %c0 = arith.constant 0 : index
    %c0_0 = arith.constant 0 : index
    %c0_1 = arith.constant 0 : index
    %1 = vector.load %arg6[%c0, %c0_0, %c0_1] : memref<2x32x32xf32, #tpu.memory_space<vmem>>, vector<2x8x32xf32>
    tpu.vector_store %arg6[%c0, %c0_0, %c0_1], %0 {strides = array<i32>} : memref<2x32x32xf32, #tpu.memory_space<vmem>>, vector<2x8x32xf32>,
    %cst_2 = arith.constant 0xFF800000 : f32
    %2 = vector.broadcast %cst_2 : f32 to vector<2x8x32xf32>
    %c0_3 = arith.constant 0 : index
    %c24 = arith.constant 24 : index
    %c0_4 = arith.constant 0 : index
    %3 = vector.load %arg6[%c0_3, %c24, %c0_4] : memref<2x32x32xf32, #tpu.memory_space<vmem>>, vector<2x8x32xf32>
    tpu.vector_store %arg6[%c0_3, %c24, %c0_4], %2 {strides = array<i32>} : memref<2x32x32xf32, #tpu.memory_space<vmem>>, vector<2x8x32xf32>,
    %cst_5 = arith.constant 0xFF800000 : f32
    %4 = vector.broadcast %cst_5 : f32 to vector<2x16x8xf32>
    %c0_6 = arith.constant 0 : index
    %c8 = arith.constant 8 : index
    %c0_7 = arith.constant 0 : index
    %5 = vector.load %arg6[%c0_6, %c8, %c0_7] : memref<2x32x32xf32, #tpu.memory_space<vmem>>, vector<2x16x8xf32>
    tpu.vector_store %arg6[%c0_6, %c8, %c0_7], %4 {strides = array<i32>} : memref<2x32x32xf32, #tpu.memory_space<vmem>>, vector<2x16x8xf32>,
    %cst_8 = arith.constant 0xFF800000 : f32
    %6 = vector.broadcast %cst_8 : f32 to vector<2x16x8xf32>
    %c0_9 = arith.constant 0 : index
    %c8_10 = arith.constant 8 : index
    %c24_11 = arith.constant 24 : index
    %7 = vector.load %arg6[%c0_9, %c8_10, %c24_11] : memref<2x32x32xf32, #tpu.memory_space<vmem>>, vector<2x16x8xf32>
    tpu.vector_store %arg6[%c0_9, %c8_10, %c24_11], %6 {strides = array<i32>} : memref<2x32x32xf32, #tpu.memory_space<vmem>>, vector<2x16x8xf32>,
    %c0_12 = arith.constant 0 : index
    %c0_13 = arith.constant 0 : index
    %c0_14 = arith.constant 0 : index
    %c0_15 = arith.constant 0 : index
    %8 = vector.load %arg2[%c0_12, %c0_13, %c0_14, %c0_15] : memref<1x2x16x16xf32, #tpu.memory_space<vmem>>, vector<1x2x16x16xf32>
    %9 = vector.shape_cast %8 : vector<1x2x16x16xf32> to vector<2x16x16xf32>
    %c0_16 = arith.constant 0 : index
    %c8_17 = arith.constant 8 : index
    %c8_18 = arith.constant 8 : index
    %10 = vector.load %arg6[%c0_16, %c8_17, %c8_18] : memref<2x32x32xf32, #tpu.memory_space<vmem>>, vector<2x16x16xf32>
    tpu.vector_store %arg6[%c0_16, %c8_17, %c8_18], %9 {strides = array<i32>} : memref<2x32x32xf32, #tpu.memory_space<vmem>>, vector<2x16x16xf32>,
    %c0_19 = arith.constant 0 : index
    %c0_20 = arith.constant 0 : index
    %c0_21 = arith.constant 0 : index
    %11 = vector.load %arg6[%c0_19, %c0_20, %c0_21] : memref<2x32x32xf32, #tpu.memory_space<vmem>>, vector<2x32x32xf32>
    %12 = vector.extract_strided_slice %11 {offsets = [0, 0, 0], sizes = [2, 30, 32], strides = [1, 1, 1]} : vector<2x32x32xf32> to vector<2x30x32xf32>
    %13 = vector.extract_strided_slice %11 {offsets = [0, 1, 0], sizes = [2, 30, 32], strides = [1, 1, 1]} : vector<2x32x32xf32> to vector<2x30x32xf32>
    %14 = arith.maximumf %12, %13 : vector<2x30x32xf32>
    %15 = vector.extract_strided_slice %14 {offsets = [0, 0, 0], sizes = [2, 28, 32], strides = [1, 1, 1]} : vector<2x30x32xf32> to vector<2x28x32xf32>
    %16 = vector.extract_strided_slice %14 {offsets = [0, 2, 0], sizes = [2, 28, 32], strides = [1, 1, 1]} : vector<2x30x32xf32> to vector<2x28x32xf32>
    %17 = arith.maximumf %15, %16 : vector<2x28x32xf32>
    %18 = vector.extract_strided_slice %11 {offsets = [0, 4, 0], sizes = [2, 28, 32], strides = [1, 1, 1]} : vector<2x32x32xf32> to vector<2x28x32xf32>
    %19 = arith.maximumf %17, %18 : vector<2x28x32xf32>
    %20 = vector.extract_strided_slice %19 {offsets = [0, 0, 0], sizes = [2, 28, 30], strides = [1, 1, 1]} : vector<2x28x32xf32> to vector<2x28x30xf32>
    %21 = vector.extract_strided_slice %19 {offsets = [0, 0, 1], sizes = [2, 28, 30], strides = [1, 1, 1]} : vector<2x28x32xf32> to vector<2x28x30xf32>
    %22 = arith.maximumf %20, %21 : vector<2x28x30xf32>
    %23 = vector.extract_strided_slice %22 {offsets = [0, 0, 0], sizes = [2, 28, 28], strides = [1, 1, 1]} : vector<2x28x30xf32> to vector<2x28x28xf32>
    %24 = vector.extract_strided_slice %22 {offsets = [0, 0, 2], sizes = [2, 28, 28], strides = [1, 1, 1]} : vector<2x28x30xf32> to vector<2x28x28xf32>
    %25 = arith.maximumf %23, %24 : vector<2x28x28xf32>
    %26 = vector.extract_strided_slice %19 {offsets = [0, 0, 4], sizes = [2, 28, 28], strides = [1, 1, 1]} : vector<2x28x32xf32> to vector<2x28x28xf32>
    %27 = arith.maximumf %25, %26 : vector<2x28x28xf32>
    %28 = vector.extract_strided_slice %27 {offsets = [0, 6, 6], sizes = [2, 16, 16], strides = [1, 1, 1]} : vector<2x28x28xf32> to vector<2x16x16xf32>
    %c0_22 = arith.constant 0 : index
    %c0_23 = arith.constant 0 : index
    %c0_24 = arith.constant 0 : index
    %c0_25 = arith.constant 0 : index
    %29 = vector.load %arg3[%c0_22, %c0_23, %c0_24, %c0_25] : memref<1x2x16x16xf32, #tpu.memory_space<vmem>>, vector<1x2x16x16xf32>
    %30 = vector.shape_cast %29 : vector<1x2x16x16xf32> to vector<2x16x16xf32>
    %31 = vector.shape_cast %28 : vector<2x16x16xf32> to vector<1x2x16x16xf32>
    tpu.vector_store %arg3[%c0_22, %c0_23, %c0_24, %c0_25], %31 {strides = array<i32>} : memref<1x2x16x16xf32, #tpu.memory_space<vmem>>, vector<1x2x16x16xf32>,
    %32 = vector.extract_strided_slice %27 {offsets = [0, 0, 0], sizes = [2, 26, 28], strides = [1, 1, 1]} : vector<2x28x28xf32> to vector<2x26x28xf32>
    %33 = vector.extract_strided_slice %27 {offsets = [0, 1, 0], sizes = [2, 26, 28], strides = [1, 1, 1]} : vector<2x28x28xf32> to vector<2x26x28xf32>
    %34 = arith.maximumf %32, %33 : vector<2x26x28xf32>
    %35 = vector.extract_strided_slice %34 {offsets = [0, 0, 0], sizes = [2, 24, 28], strides = [1, 1, 1]} : vector<2x26x28xf32> to vector<2x24x28xf32>
    %36 = vector.extract_strided_slice %34 {offsets = [0, 2, 0], sizes = [2, 24, 28], strides = [1, 1, 1]} : vector<2x26x28xf32> to vector<2x24x28xf32>
    %37 = arith.maximumf %35, %36 : vector<2x24x28xf32>
    %38 = vector.extract_strided_slice %27 {offsets = [0, 4, 0], sizes = [2, 24, 28], strides = [1, 1, 1]} : vector<2x28x28xf32> to vector<2x24x28xf32>
    %39 = arith.maximumf %37, %38 : vector<2x24x28xf32>
    %40 = vector.extract_strided_slice %39 {offsets = [0, 0, 0], sizes = [2, 24, 26], strides = [1, 1, 1]} : vector<2x24x28xf32> to vector<2x24x26xf32>
    %41 = vector.extract_strided_slice %39 {offsets = [0, 0, 1], sizes = [2, 24, 26], strides = [1, 1, 1]} : vector<2x24x28xf32> to vector<2x24x26xf32>
    %42 = arith.maximumf %40, %41 : vector<2x24x26xf32>
    %43 = vector.extract_strided_slice %42 {offsets = [0, 0, 0], sizes = [2, 24, 24], strides = [1, 1, 1]} : vector<2x24x26xf32> to vector<2x24x24xf32>
    %44 = vector.extract_strided_slice %42 {offsets = [0, 0, 2], sizes = [2, 24, 24], strides = [1, 1, 1]} : vector<2x24x26xf32> to vector<2x24x24xf32>
    %45 = arith.maximumf %43, %44 : vector<2x24x24xf32>
    %46 = vector.extract_strided_slice %39 {offsets = [0, 0, 4], sizes = [2, 24, 24], strides = [1, 1, 1]} : vector<2x24x28xf32> to vector<2x24x24xf32>
    %47 = arith.maximumf %45, %46 : vector<2x24x24xf32>
    %48 = vector.extract_strided_slice %47 {offsets = [0, 4, 4], sizes = [2, 16, 16], strides = [1, 1, 1]} : vector<2x24x24xf32> to vector<2x16x16xf32>
    %c0_26 = arith.constant 0 : index
    %c0_27 = arith.constant 0 : index
    %c0_28 = arith.constant 0 : index
    %c0_29 = arith.constant 0 : index
    %49 = vector.load %arg4[%c0_26, %c0_27, %c0_28, %c0_29] : memref<1x2x16x16xf32, #tpu.memory_space<vmem>>, vector<1x2x16x16xf32>
    %50 = vector.shape_cast %49 : vector<1x2x16x16xf32> to vector<2x16x16xf32>
    %51 = vector.shape_cast %48 : vector<2x16x16xf32> to vector<1x2x16x16xf32>
    tpu.vector_store %arg4[%c0_26, %c0_27, %c0_28, %c0_29], %51 {strides = array<i32>} : memref<1x2x16x16xf32, #tpu.memory_space<vmem>>, vector<1x2x16x16xf32>,
    %52 = vector.extract_strided_slice %47 {offsets = [0, 0, 0], sizes = [2, 22, 24], strides = [1, 1, 1]} : vector<2x24x24xf32> to vector<2x22x24xf32>
    %53 = vector.extract_strided_slice %47 {offsets = [0, 1, 0], sizes = [2, 22, 24], strides = [1, 1, 1]} : vector<2x24x24xf32> to vector<2x22x24xf32>
    %54 = arith.maximumf %52, %53 : vector<2x22x24xf32>
    %55 = vector.extract_strided_slice %54 {offsets = [0, 0, 0], sizes = [2, 20, 24], strides = [1, 1, 1]} : vector<2x22x24xf32> to vector<2x20x24xf32>
    %56 = vector.extract_strided_slice %54 {offsets = [0, 2, 0], sizes = [2, 20, 24], strides = [1, 1, 1]} : vector<2x22x24xf32> to vector<2x20x24xf32>
    %57 = arith.maximumf %55, %56 : vector<2x20x24xf32>
    %58 = vector.extract_strided_slice %47 {offsets = [0, 4, 0], sizes = [2, 20, 24], strides = [1, 1, 1]} : vector<2x24x24xf32> to vector<2x20x24xf32>
    %59 = arith.maximumf %57, %58 : vector<2x20x24xf32>
    %60 = vector.extract_strided_slice %59 {offsets = [0, 0, 0], sizes = [2, 20, 22], strides = [1, 1, 1]} : vector<2x20x24xf32> to vector<2x20x22xf32>
    %61 = vector.extract_strided_slice %59 {offsets = [0, 0, 1], sizes = [2, 20, 22], strides = [1, 1, 1]} : vector<2x20x24xf32> to vector<2x20x22xf32>
    %62 = arith.maximumf %60, %61 : vector<2x20x22xf32>
    %63 = vector.extract_strided_slice %62 {offsets = [0, 0, 0], sizes = [2, 20, 20], strides = [1, 1, 1]} : vector<2x20x22xf32> to vector<2x20x20xf32>
    %64 = vector.extract_strided_slice %62 {offsets = [0, 0, 2], sizes = [2, 20, 20], strides = [1, 1, 1]} : vector<2x20x22xf32> to vector<2x20x20xf32>
    %65 = arith.maximumf %63, %64 : vector<2x20x20xf32>
    %66 = vector.extract_strided_slice %59 {offsets = [0, 0, 4], sizes = [2, 20, 20], strides = [1, 1, 1]} : vector<2x20x24xf32> to vector<2x20x20xf32>
    %67 = arith.maximumf %65, %66 : vector<2x20x20xf32>
    %68 = vector.extract_strided_slice %67 {offsets = [0, 2, 2], sizes = [2, 16, 16], strides = [1, 1, 1]} : vector<2x20x20xf32> to vector<2x16x16xf32>
    %c0_30 = arith.constant 0 : index
    %c0_31 = arith.constant 0 : index
    %c0_32 = arith.constant 0 : index
    %c0_33 = arith.constant 0 : index
    %69 = vector.load %arg5[%c0_30, %c0_31, %c0_32, %c0_33] : memref<1x2x16x16xf32, #tpu.memory_space<vmem>>, vector<1x2x16x16xf32>
    %70 = vector.shape_cast %69 : vector<1x2x16x16xf32> to vector<2x16x16xf32>
    %71 = vector.shape_cast %68 : vector<2x16x16xf32> to vector<1x2x16x16xf32>
    tpu.vector_store %arg5[%c0_30, %c0_31, %c0_32, %c0_33], %71 {strides = array<i32>} : memref<1x2x16x16xf32, #tpu.memory_space<vmem>>, vector<1x2x16x16xf32>,
    return
  }
  func.func @transform_0(%arg0: i32, %arg1: i32) -> (i32, i32, i32, i32) {
    %c0_i32 = arith.constant 0 : i32
    %c0_i32_0 = arith.constant 0 : i32
    %c0_i32_1 = arith.constant 0 : i32
    return %arg0, %arg1, %c0_i32, %c0_i32_0 : i32, i32, i32, i32
  }
  func.func @transform_1(%arg0: i32, %arg1: i32) -> (i32, i32, i32, i32) {
    %c0_i32 = arith.constant 0 : i32
    %c0_i32_0 = arith.constant 0 : i32
    %c0_i32_1 = arith.constant 0 : i32
    return %arg0, %arg1, %c0_i32, %c0_i32_0 : i32, i32, i32, i32
  }
  func.func @transform_2(%arg0: i32, %arg1: i32) -> (i32, i32, i32, i32) {
    %c0_i32 = arith.constant 0 : i32
    %c0_i32_0 = arith.constant 0 : i32
    %c0_i32_1 = arith.constant 0 : i32
    return %arg0, %arg1, %c0_i32, %c0_i32_0 : i32, i32, i32, i32
  }
  func.func @transform_3(%arg0: i32, %arg1: i32) -> (i32, i32, i32, i32) {
    %c0_i32 = arith.constant 0 : i32
    %c0_i32_0 = arith.constant 0 : i32
    %c0_i32_1 = arith.constant 0 : i32
    return %arg0, %arg1, %c0_i32, %c0_i32_0 : i32, i32, i32, i32
  }
}

module attributes {stable_mosaic.version = 11 : i64} {
  func.func @kernel(%arg0: i32, %arg1: i32, %arg2: memref<1x2x256xf32, #tpu.memory_space<vmem>>, %arg3: memref<1x2x256xf32, #tpu.memory_space<vmem>>, %arg4: memref<1x2x256xf32, #tpu.memory_space<vmem>>, %arg5: memref<1x2x256xf32, #tpu.memory_space<vmem>>, %arg6: memref<8x2xf32, #tpu.memory_space<vmem>>, %arg7: memref<8x2xf32, #tpu.memory_space<vmem>>, %arg8: memref<8x2xf32, #tpu.memory_space<vmem>>, %arg9: memref<8x2xf32, #tpu.memory_space<vmem>>, %arg10: memref<8x1xf32, #tpu.memory_space<vmem>>, %arg11: memref<1x8x256xf32, #tpu.memory_space<vmem>>) attributes {dimension_semantics = [#tpu.dimension_semantics<parallel>, #tpu.dimension_semantics<parallel>], iteration_bounds = array<i64: 2, 1>, scalar_prefetch = 0 : i64, scratch_operands = 0 : i64, tpu.core_type = #tpu.core_type<tc>, window_params = [{transform_indices = @transform_0, window_bounds = array<i64: 1, 2, 256>}, {transform_indices = @transform_1, window_bounds = array<i64: 1, 2, 256>}, {transform_indices = @transform_2, window_bounds = array<i64: 1, 2, 256>}, {transform_indices = @transform_3, window_bounds = array<i64: 1, 2, 256>}, {pipeline_mode = #tpu.pipeline_mode<synchronous>, transform_indices = @transform_4, window_bounds = array<i64: 8, 2>}, {pipeline_mode = #tpu.pipeline_mode<synchronous>, transform_indices = @transform_5, window_bounds = array<i64: 8, 2>}, {pipeline_mode = #tpu.pipeline_mode<synchronous>, transform_indices = @transform_6, window_bounds = array<i64: 8, 2>}, {pipeline_mode = #tpu.pipeline_mode<synchronous>, transform_indices = @transform_7, window_bounds = array<i64: 8, 2>}, {pipeline_mode = #tpu.pipeline_mode<synchronous>, transform_indices = @transform_8, window_bounds = array<i64: 8, 1>}, {transform_indices = @transform_9, window_bounds = array<i64: 1, 8, 256>}]} {
    %c0 = arith.constant 0 : index
    %c0_0 = arith.constant 0 : index
    %c0_1 = arith.constant 0 : index
    %0 = vector.load %arg2[%c0, %c0_0, %c0_1] : memref<1x2x256xf32, #tpu.memory_space<vmem>>, vector<1x2x256xf32>
    %1 = vector.shape_cast %0 : vector<1x2x256xf32> to vector<2x256xf32>
    %c0_2 = arith.constant 0 : index
    %c0_3 = arith.constant 0 : index
    %2 = vector.load %arg6[%c0_2, %c0_3] : memref<8x2xf32, #tpu.memory_space<vmem>>, vector<8x2xf32>
    %cst = arith.constant dense<0.000000e+00> : vector<8x256xf32>
    %3 = tpu.matmul %2, %1, %cst {dimension_numbers = #tpu.dot_dimension_numbers<[1], [0], [0], [1], [0, 0, 1, 1], [], []>} : vector<8x2xf32>, vector<2x256xf32>, vector<8x256xf32> -> vector<8x256xf32>
    %c0_4 = arith.constant 0 : index
    %c0_5 = arith.constant 0 : index
    %c0_6 = arith.constant 0 : index
    %4 = vector.load %arg3[%c0_4, %c0_5, %c0_6] : memref<1x2x256xf32, #tpu.memory_space<vmem>>, vector<1x2x256xf32>
    %5 = vector.shape_cast %4 : vector<1x2x256xf32> to vector<2x256xf32>
    %c0_7 = arith.constant 0 : index
    %c0_8 = arith.constant 0 : index
    %6 = vector.load %arg7[%c0_7, %c0_8] : memref<8x2xf32, #tpu.memory_space<vmem>>, vector<8x2xf32>
    %cst_9 = arith.constant dense<0.000000e+00> : vector<8x256xf32>
    %7 = tpu.matmul %6, %5, %cst_9 {dimension_numbers = #tpu.dot_dimension_numbers<[1], [0], [0], [1], [0, 0, 1, 1], [], []>} : vector<8x2xf32>, vector<2x256xf32>, vector<8x256xf32> -> vector<8x256xf32>
    %8 = arith.addf %3, %7 : vector<8x256xf32>
    %c0_10 = arith.constant 0 : index
    %c0_11 = arith.constant 0 : index
    %c0_12 = arith.constant 0 : index
    %9 = vector.load %arg4[%c0_10, %c0_11, %c0_12] : memref<1x2x256xf32, #tpu.memory_space<vmem>>, vector<1x2x256xf32>
    %10 = vector.shape_cast %9 : vector<1x2x256xf32> to vector<2x256xf32>
    %c0_13 = arith.constant 0 : index
    %c0_14 = arith.constant 0 : index
    %11 = vector.load %arg8[%c0_13, %c0_14] : memref<8x2xf32, #tpu.memory_space<vmem>>, vector<8x2xf32>
    %cst_15 = arith.constant dense<0.000000e+00> : vector<8x256xf32>
    %12 = tpu.matmul %11, %10, %cst_15 {dimension_numbers = #tpu.dot_dimension_numbers<[1], [0], [0], [1], [0, 0, 1, 1], [], []>} : vector<8x2xf32>, vector<2x256xf32>, vector<8x256xf32> -> vector<8x256xf32>
    %13 = arith.addf %8, %12 : vector<8x256xf32>
    %c0_16 = arith.constant 0 : index
    %c0_17 = arith.constant 0 : index
    %c0_18 = arith.constant 0 : index
    %14 = vector.load %arg5[%c0_16, %c0_17, %c0_18] : memref<1x2x256xf32, #tpu.memory_space<vmem>>, vector<1x2x256xf32>
    %15 = vector.shape_cast %14 : vector<1x2x256xf32> to vector<2x256xf32>
    %c0_19 = arith.constant 0 : index
    %c0_20 = arith.constant 0 : index
    %16 = vector.load %arg9[%c0_19, %c0_20] : memref<8x2xf32, #tpu.memory_space<vmem>>, vector<8x2xf32>
    %cst_21 = arith.constant dense<0.000000e+00> : vector<8x256xf32>
    %17 = tpu.matmul %16, %15, %cst_21 {dimension_numbers = #tpu.dot_dimension_numbers<[1], [0], [0], [1], [0, 0, 1, 1], [], []>} : vector<8x2xf32>, vector<2x256xf32>, vector<8x256xf32> -> vector<8x256xf32>
    %18 = arith.addf %13, %17 : vector<8x256xf32>
    %c0_22 = arith.constant 0 : index
    %c0_23 = arith.constant 0 : index
    %19 = vector.load %arg10[%c0_22, %c0_23] : memref<8x1xf32, #tpu.memory_space<vmem>>, vector<8x1xf32>
    %20 = vector.broadcast %19 : vector<8x1xf32> to vector<8x256xf32>
    %21 = arith.addf %18, %20 : vector<8x256xf32>
    %22 = arith.negf %21 : vector<8x256xf32>
    %23 = math.exp %22 : vector<8x256xf32>
    %cst_24 = arith.constant 1.000000e+00 : f32
    %24 = vector.broadcast %cst_24 : f32 to vector<8x256xf32>
    %25 = arith.addf %24, %23 : vector<8x256xf32>
    %26 = arith.divf %24, %25 : vector<8x256xf32>
    %27 = arith.mulf %21, %26 : vector<8x256xf32>
    %c0_25 = arith.constant 0 : index
    %c0_26 = arith.constant 0 : index
    %c0_27 = arith.constant 0 : index
    %28 = vector.load %arg11[%c0_25, %c0_26, %c0_27] : memref<1x8x256xf32, #tpu.memory_space<vmem>>, vector<1x8x256xf32>
    %29 = vector.shape_cast %28 : vector<1x8x256xf32> to vector<8x256xf32>
    %30 = vector.shape_cast %27 : vector<8x256xf32> to vector<1x8x256xf32>
    tpu.vector_store %arg11[%c0_25, %c0_26, %c0_27], %30 {strides = array<i32>} : memref<1x8x256xf32, #tpu.memory_space<vmem>>, vector<1x8x256xf32>,
    return
  }
  func.func @transform_0(%arg0: i32, %arg1: i32) -> (i32, i32, i32) {
    %c0_i32 = arith.constant 0 : i32
    %c0_i32_0 = arith.constant 0 : i32
    return %arg0, %c0_i32, %arg1 : i32, i32, i32
  }
  func.func @transform_1(%arg0: i32, %arg1: i32) -> (i32, i32, i32) {
    %c0_i32 = arith.constant 0 : i32
    %c0_i32_0 = arith.constant 0 : i32
    return %arg0, %c0_i32, %arg1 : i32, i32, i32
  }
  func.func @transform_2(%arg0: i32, %arg1: i32) -> (i32, i32, i32) {
    %c0_i32 = arith.constant 0 : i32
    %c0_i32_0 = arith.constant 0 : i32
    return %arg0, %c0_i32, %arg1 : i32, i32, i32
  }
  func.func @transform_3(%arg0: i32, %arg1: i32) -> (i32, i32, i32) {
    %c0_i32 = arith.constant 0 : i32
    %c0_i32_0 = arith.constant 0 : i32
    return %arg0, %c0_i32, %arg1 : i32, i32, i32
  }
  func.func @transform_4(%arg0: i32, %arg1: i32) -> (i32, i32) {
    %c0_i32 = arith.constant 0 : i32
    %c0_i32_0 = arith.constant 0 : i32
    %c0_i32_1 = arith.constant 0 : i32
    return %c0_i32, %c0_i32_0 : i32, i32
  }
  func.func @transform_5(%arg0: i32, %arg1: i32) -> (i32, i32) {
    %c0_i32 = arith.constant 0 : i32
    %c0_i32_0 = arith.constant 0 : i32
    %c0_i32_1 = arith.constant 0 : i32
    return %c0_i32, %c0_i32_0 : i32, i32
  }
  func.func @transform_6(%arg0: i32, %arg1: i32) -> (i32, i32) {
    %c0_i32 = arith.constant 0 : i32
    %c0_i32_0 = arith.constant 0 : i32
    %c0_i32_1 = arith.constant 0 : i32
    return %c0_i32, %c0_i32_0 : i32, i32
  }
  func.func @transform_7(%arg0: i32, %arg1: i32) -> (i32, i32) {
    %c0_i32 = arith.constant 0 : i32
    %c0_i32_0 = arith.constant 0 : i32
    %c0_i32_1 = arith.constant 0 : i32
    return %c0_i32, %c0_i32_0 : i32, i32
  }
  func.func @transform_8(%arg0: i32, %arg1: i32) -> (i32, i32) {
    %c0_i32 = arith.constant 0 : i32
    %c0_i32_0 = arith.constant 0 : i32
    %c0_i32_1 = arith.constant 0 : i32
    return %c0_i32, %c0_i32_0 : i32, i32
  }
  func.func @transform_9(%arg0: i32, %arg1: i32) -> (i32, i32, i32) {
    %c0_i32 = arith.constant 0 : i32
    %c0_i32_0 = arith.constant 0 : i32
    return %arg0, %c0_i32, %arg1 : i32, i32, i32
  }
}

</mosaic_0001>

<llo_original>
// kernel: sppf_forward.3
$region0: #{sppf_forward.3}
  #allocation0 [shape = 'u32[]', space=smem, size = 0x4, offset = 0x4, fixed_abs, tag = 'smem constant byte address 0x4 - core index']
  #allocation1 [shape = 'u32[144,128]{1,0:T(1,128)}', space=vmem, size = 0x12000, scoped, tag = 'internal scratch']
  %s0 = inlined_call_operand.vmem [shape: f32[2,4,256], index: 0, kind: input, shape index: {}]
  %s1 = inlined_call_operand.vmem [shape: f32[2,4], index: 1, kind: input, shape index: {}]
  %s2 = inlined_call_operand.vmem [shape: f32[2,1], index: 2, kind: input, shape index: {}]
  %s3 = inlined_call_operand.vmem [shape: f32[2,2,256], index: 3, kind: output, shape index: {}]
  %s4 = sld [smem:[#allocation0]]
  $region45: #{sppf_forward.3} parent=0
    _
  %s6 = ssub.s32 1, %s4
  %s7 = scalar_select 0, %s6, %s4
  loop: start=0, step=1, limit=4
  $region2: #{sppf_forward.3} parent=0 // loop_pre_header
    _
  $region3: #{sppf_forward.3} parent=0 // loop_header
    %s9 = sphi 0, %s13
    %p10 = scmp.ge.s32.totalorder %s9, 4
    %s16 = sphi 0, %s28
    %s17 = sphi 0, %s24
    %s18 = sphi 0, %s16
    %s19 = sphi 0, %s17
    %s20 = sphi 0, %s18
    %s21 = sphi 0, %s19
    %s33 = sphi 0, %s35
    %s36 = sphi 0, %s33
    %s37 = sphi 0, %s36
    %s53 = sphi 0, %s37
    %s57 = sphi 0, %s57
    %s59 = sphi 0, %s57
    %s60 = sphi 0, %s59
    %s74 = sphi 0, %s60
    %s78 = sphi 0, %s78
    %s80 = sphi 0, %s78
    %s81 = sphi 0, %s80
    %s95 = sphi 0, %s81
    %s103 = sphi 0, %s105
    %s106 = sphi 0, %s103
    %s107 = sphi 0, %s106
    %s123 = sphi 0, %s107
  $region4: #{sppf_forward.3} parent=0 // loop_header_branch
    %12 = sbr.rel (%p10) target = $region8
  $region5: #{sppf_forward.3} parent=0 // loop_body
    %s14 = ssub.s32 %s9, 1
    %s15 = ssub.s32 %s9, 2
    %s22 = sadd.s32 1, %s17
    %p23 = scmp.ge.s32.totalorder %s22, 1
    %s24 = scalar_select %p23, 0, %s22
    %s25 = sadd.s32 1, %s16
    %s26 = scalar_select %p23, %s25, %s16
    %p27 = scmp.ge.s32.totalorder %s26, 2
    %s28 = scalar_select %p27, 0, %s26
    %s29 = ssub.s32 %s16, %s28
    %s30 = ssub.s32 %s17, %s24
    %s31 = sor.u32 %s29, %s30
    %p32 = scmp.eq.s32.totalorder %s31, 0
    %s34 = sadd.s32 %s33, 1
    %s35 = scalar_select %p32, %s33, %s34
    %p38 = pneg %p32
    %p39 = scmp.eq.s32.totalorder %s9, 1
    %p40 = por %p38, %p39
    %p41 = scmp.ne.s32.totalorder %s33, %s36
    %p42 = scmp.eq.s32.totalorder %s9, 0
    %p43 = por %p41, %p42
    %p44 = scmp.ne.s32.totalorder %s33, %s36
    %p45 = scmp.eq.s32.totalorder %s14, 1
    %p46 = por %p44, %p45
    %p47 = scmp.ne.s32.totalorder %s36, %s37
    %p48 = scmp.eq.s32.totalorder %s14, 0
    %p49 = por %p47, %p48
    %p50 = scmp.ne.s32.totalorder %s36, %s37
    %p51 = scmp.eq.s32.totalorder %s15, 1
    %p52 = por %p50, %p51
    %p54 = scmp.ne.s32.totalorder %s37, %s53
    %p55 = scmp.eq.s32.totalorder %s15, 0
    %p56 = por %p54, %p55
    %s58 = sadd.s32 %s57, 1
    %p61 = scmp.eq.s32.totalorder %s9, 1
    %p62 = scmp.ne.s32.totalorder %s57, %s59
    %p63 = scmp.eq.s32.totalorder %s9, 0
    %p64 = por %p62, %p63
    %p65 = scmp.ne.s32.totalorder %s57, %s59
    %p66 = scmp.eq.s32.totalorder %s14, 1
    %p67 = por %p65, %p66
    %p68 = scmp.ne.s32.totalorder %s59, %s60
    %p69 = scmp.eq.s32.totalorder %s14, 0
    %p70 = por %p68, %p69
    %p71 = scmp.ne.s32.totalorder %s59, %s60
    %p72 = scmp.eq.s32.totalorder %s15, 1
    %p73 = por %p71, %p72
    %p75 = scmp.ne.s32.totalorder %s60, %s74
    %p76 = scmp.eq.s32.totalorder %s15, 0
    %p77 = por %p75, %p76
    %s79 = sadd.s32 %s78, 1
    %p82 = scmp.eq.s32.totalorder %s9, 1
    %p83 = scmp.ne.s32.totalorder %s78, %s80
    %p84 = scmp.eq.s32.totalorder %s9, 0
    %p85 = por %p83, %p84
    %p86 = scmp.ne.s32.totalorder %s78, %s80
    %p87 = scmp.eq.s32.totalorder %s14, 1
    %p88 = por %p86, %p87
    %p89 = scmp.ne.s32.totalorder %s80, %s81
    %p90 = scmp.eq.s32.totalorder %s14, 0
    %p91 = por %p89, %p90
    %p92 = scmp.ne.s32.totalorder %s80, %s81
    %p93 = scmp.eq.s32.totalorder %s15, 1
    %p94 = por %p92, %p93
    %p96 = scmp.ne.s32.totalorder %s81, %s95
    %p97 = scmp.eq.s32.totalorder %s15, 0
    %p98 = por %p96, %p97
    %s99 = ssub.s32 %s16, %s28
    %s100 = ssub.s32 %s17, %s24
    %s101 = sor.u32 %s99, %s100
    %p102 = scmp.eq.s32.totalorder %s101, 0
    %s104 = sadd.s32 %s103, 1
    %s105 = scalar_select %p102, %s103, %s104
    %p108 = pneg %p102
    %p109 = scmp.eq.s32.totalorder %s9, 1
    %p110 = por %p108, %p109
    %p111 = scmp.ne.s32.totalorder %s103, %s106
    %p112 = scmp.eq.s32.totalorder %s9, 0
    %p113 = por %p111, %p112
    %p114 = scmp.ne.s32.totalorder %s103, %s106
    %p115 = scmp.eq.s32.totalorder %s14, 1
    %p116 = por %p114, %p115
    %p117 = scmp.ne.s32.totalorder %s106, %s107
    %p118 = scmp.eq.s32.totalorder %s14, 0
    %p119 = por %p117, %p118
    %p120 = scmp.ne.s32.totalorder %s106, %s107
    %p121 = scmp.eq.s32.totalorder %s15, 1
    %p122 = por %p120, %p121
    %p124 = scmp.ne.s32.totalorder %s107, %s123
    %p125 = scmp.eq.s32.totalorder %s15, 0
    %p126 = por %p124, %p125
    %p127 = scmp.le.s32.totalorder 1, %s9
    %p128 = scmp.lt.s32.totalorder %s9, 3
    %p129 = pnand %p127, %p128
    %p130 = pneg %p129
    // Predicated region
    $region9: #{sppf_forward.3} parent=5 // pred_check
      _
    $region10: #{sppf_forward.3} parent=5 // pred_check_branch
      %132 = sbr.rel (%p129) target = $region12
    $region11: #{sppf_forward.3} parent=5 // pred_region
      %s133 = ssub.s32 %s9, 1
      // Predicated region
      $region13: #{sppf_forward.3} parent=11 // pred_check
        %p134 = pneg %p70
      $region14: #{sppf_forward.3} parent=11 // pred_check_branch
        %136 = sbr.rel (%p134) target = $region16
      $region15: #{sppf_forward.3} parent=11 // pred_region
        _
      $region16: #{sppf_forward.3} parent=11 // pred_fallthru
        _
      // Predicated region
      $region17: #{sppf_forward.3} parent=11 // pred_check
        %p137 = pneg %p91
      $region18: #{sppf_forward.3} parent=11 // pred_check_branch
        %139 = sbr.rel (%p137) target = $region20
      $region19: #{sppf_forward.3} parent=11 // pred_region
        _
      $region20: #{sppf_forward.3} parent=11 // pred_fallthru
        _
    $region12: #{sppf_forward.3} parent=5 // pred_fallthru
      _
    %p140 = scmp.lt.s32.totalorder %s9, 2
    // Predicated region
    $region21: #{sppf_forward.3} parent=5 // pred_check
      %p141 = pneg %p140
    $region22: #{sppf_forward.3} parent=5 // pred_check_branch
      %143 = sbr.rel (%p141) target = $region24
    $region23: #{sppf_forward.3} parent=5 // pred_region
      // Predicated region
      $region25: #{sppf_forward.3} parent=23 // pred_check
        %p144 = pneg %p43
      $region26: #{sppf_forward.3} parent=23 // pred_check_branch
        %146 = sbr.rel (%p144) target = $region28
      $region27: #{sppf_forward.3} parent=23 // pred_region
        %s147 = smul.u32 2, %s17
        %p148 = scmp.lt.s32.totalorder %s16, 1
        %s149 = scalar_select %p148, %s16, 1
        %p150 = scmp.lt.s32.totalorder %s147, 1
        %s151 = scalar_select %p150, %s147, 1
        %s152 = smul.addr %s149, 2
        %s153 = sadd.s32 %s151, %s152
        %s154 = smul.addr %s153, 4
        %s155 = scalar_lea.vmem %s0, %s154
        %s156 = smul.u32 2, %s17
      $region28: #{sppf_forward.3} parent=23 // pred_fallthru
        _
    $region24: #{sppf_forward.3} parent=5 // pred_fallthru
      _
    %p157 = scmp.le.s32.totalorder 1, %s9
    %p158 = scmp.lt.s32.totalorder %s9, 3
    %p159 = pnand %p157, %p158
    %p160 = pneg %p159
    // Predicated region
    $region29: #{sppf_forward.3} parent=5 // pred_check
      _
    $region30: #{sppf_forward.3} parent=5 // pred_check_branch
      %162 = sbr.rel (%p159) target = $region32
    $region31: #{sppf_forward.3} parent=5 // pred_region
      %s163 = ssub.s32 %s9, 1
      %s164 = smul.u32 2, %s19
      %p165 = scmp.lt.s32.totalorder %s18, 1
      %s166 = scalar_select %p165, %s18, 1
      %p167 = scmp.lt.s32.totalorder %s164, 1
      %s168 = scalar_select %p167, %s164, 1
      %s169 = smul.addr %s166, 2
      %s170 = sadd.s32 %s168, %s169
      %s171 = smul.addr %s170, 4
      %s172 = scalar_lea.vmem %s0, %s171
      %p173 = pneg %p49
      %p174 = pneg %p46
      %p175 = pneg %p70
      %p176 = pneg %p67
      %p177 = pneg %p91
      %p178 = pneg %p88
      %p179 = pneg %p119
      %p180 = pneg %p116
      %s181 = smul.u32 2, %s19
      %p182 = scmp.lt.s32.totalorder %s18, 1
      %s183 = scalar_select %p182, %s18, 1
      %p184 = scmp.lt.s32.totalorder %s181, 1
      %s185 = scalar_select %p184, %s181, 1
      %s186 = smul.addr %s183, 2
      %s187 = sadd.s32 %s185, %s186
      %s188 = smul.addr %s187, 2
      %s189 = scalar_lea.vmem %s3, %s188
      %s190 = smul.u32 2, %s19
      %p191 = scmp.lt.s32.totalorder %s18, 1
      %s192 = scalar_select %p191, %s18, 1
      %p193 = scmp.lt.s32.totalorder %s190, 1
      %s194 = scalar_select %p193, %s190, 1
      %s195 = smul.addr %s192, 2
      %s196 = sadd.s32 %s194, %s195
      %s197 = smul.addr %s196, 4
      %s198 = scalar_lea.vmem %s0, %s197
      %s199 = smul.u32 2, %s19
      %s200 = smul.u32 2, %s19
      %p201 = scmp.lt.s32.totalorder %s18, 1
      %s202 = scalar_select %p201, %s18, 1
      %p203 = scmp.lt.s32.totalorder %s200, 1
      %s204 = scalar_select %p203, %s200, 1
      %s205 = smul.addr %s202, 2
      %s206 = sadd.s32 %s204, %s205
      %s207 = smul.addr %s206, 2
      %s208 = scalar_lea.vmem %s3, %s207
      %s209 = smul.u32 2, %s19
      %v210 = vld [vmem:[%s198] sm:$0xff]
      %v211 = vld [vmem:[%s1] sm:$0x3]
      %v212 = vld [vmem:[%s2] sm:$0x3]
      %214 = vset.pattern.permute.xlu0 0
      %215 = vperm.xlu0 %214, %v212
      %v216 = vpop.permute.xlu0 %215
      %v219 = vcombine.high %v210, %v210
      %vm220 = vcmask 31744
      %v222 = vsel %vm220, %v211, 0
      %vm224 = vcmask 1043456
      %v225 = vsel %vm224, %v210, 0
      %v227 = vsel %vm224, %v219, 0
      %229 = vmatprep.subr.mxu0 %v227
      %230 = vmatpush1.msra.mxu0 %v225
      %231 = vmatprep.subr.mxu0 0.0
      %232 = vmatpush1.msra.mxu0 0.0
      %233 = vmatprep.subr.mxu0 0.0
      %234 = vmatpush1.msra.mxu0 0.0
      %235 = vmatprep.subr.mxu0 0.0
      %236 = vmatpush1.msra.mxu0 0.0
      %237 = vmatprep.subr.mxu0 0.0
      %238 = vmatpush1.msra.mxu0 0.0
      %239 = vmatprep.subr.mxu0 0.0
      %240 = vmatpush1.msra.mxu0 0.0
      %241 = vmatprep.subr.mxu0 0.0
      %242 = vmatpush1.msra.mxu0 0.0
      %243 = vmatprep.subr.mxu0 0.0
      %244 = vmatpush1.msra.mxu0 0.0
      %245 = vmatprep.subr.mxu0 0.0
      %246 = vmatpush1.msra.mxu0 0.0
      %247 = vmatprep.subr.mxu0 0.0
      %248 = vmatpush1.msra.mxu0 0.0
      %249 = vmatprep.subr.mxu0 0.0
      %250 = vmatpush1.msra.mxu0 0.0
      %251 = vmatprep.subr.mxu0 0.0
      %252 = vmatpush1.msra.mxu0 0.0
      %253 = vmatprep.subr.mxu0 0.0
      %254 = vmatpush1.msra.mxu0 0.0
      %255 = vmatprep.subr.mxu0 0.0
      %256 = vmatpush1.msra.mxu0 0.0
      %257 = vmatprep.subr.mxu0 0.0
      %258 = vmatpush1.msra.mxu0 0.0
      %259 = vmatprep.subr.mxu0 0.0
      %260 = vmatpush1.msra.mxu0 0.0
      %261 = vmatprep.subr.mxu0 0.0
      %262 = vmatpush1.msra.mxu0 0.0
      %263 = vmatprep.subr.mxu0 0.0
      %264 = vmatpush1.msra.mxu0 0.0
      %265 = vmatprep.subr.mxu0 0.0
      %266 = vmatpush1.msra.mxu0 0.0
      %267 = vmatprep.subr.mxu0 0.0
      %268 = vmatpush1.msra.mxu0 0.0
      %269 = vmatprep.subr.mxu0 0.0
      %270 = vmatpush1.msra.mxu0 0.0
      %271 = vmatprep.subr.mxu0 0.0
      %272 = vmatpush1.msra.mxu0 0.0
      %273 = vmatprep.subr.mxu0 0.0
      %274 = vmatpush1.msra.mxu0 0.0
      %275 = vmatprep.subr.mxu0 0.0
      %276 = vmatpush1.msra.mxu0 0.0
      %277 = vmatprep.subr.mxu0 0.0
      %278 = vmatpush1.msra.mxu0 0.0
      %279 = vmatprep.subr.mxu0 0.0
      %280 = vmatpush1.msra.mxu0 0.0
      %281 = vmatprep.subr.mxu0 0.0
      %282 = vmatpush1.msra.mxu0 0.0
      %283 = vmatprep.subr.mxu0 0.0
      %284 = vmatpush1.msra.mxu0 0.0
      %285 = vmatprep.subr.mxu0 0.0
      %286 = vmatpush1.msra.mxu0 0.0
      %287 = vmatprep.subr.mxu0 0.0
      %288 = vmatpush1.msra.mxu0 0.0
      %289 = vmatprep.subr.mxu0 0.0
      %290 = vmatpush1.msra.mxu0 0.0
      %291 = vmatprep.subr.mxu0 0.0
      %292 = vmatpush1.msra.mxu0 0.0
      %293 = vmatprep.mubr.f32.mxu0 0.0
      %294 = vmatmul.mubr.f32.gmra.mrb[0].mxu0 %v222
      %v295 = vpop.f32.mrb[0].mxu0
      %v296 = vadd.f32 %v216, %v295
      %v297 = vpop.f32.mrb[0].mxu0
      %v298 = vadd.f32 %v216, %v297
      %299 = vdwg.mxu0
      %v300 = vxor.u32 %v296, 2147483648
      %v301 = vxor.u32 %v298, 2147483648
      %v302 = vmul.f32 %v300, 1.442695
      %v303 = vpow.pop %v302
      %v304 = vmul.f32 %v301, 1.442695
      %v305 = vpow.pop %v304
      %v306 = vadd.f32 %v303, 1.0
      %v307 = vadd.f32 %v305, 1.0
      %v308 = vrcp.pop %v306
      %v309 = vmul.f32 1.0, %v308
      %v310 = vrcp.pop %v307
      %v311 = vmul.f32 1.0, %v310
      %v312 = vmul.f32 %v296, %v309
      %v313 = vmul.f32 %v298, %v311
      %v316 = vcombine.low %v312, %v313
      %v318 = vunpack.c.l.s4 1983009808
      %v319 = vunpack.c.0.s8 %v318
      %v320 = vlaneseq
      %v321 = vshrl.u32 %v320, 7
      %v322 = vsub.s32 %v319, %v321
      %v323 = vrot.slane %v316, %v322
      %325 = vst [vmem:[%s208] sm:$0xf] %v323
      %s326 = smul.u32 2, %s19
      %p327 = scmp.lt.s32.totalorder %s18, 1
      %s328 = scalar_select %p327, %s18, 1
      %p329 = scmp.lt.s32.totalorder %s326, 1
      %s330 = scalar_select %p329, %s326, 1
      %s331 = smul.addr %s328, 2
      %s332 = sadd.s32 %s330, %s331
      %s333 = smul.addr %s332, 2
      %s334 = scalar_lea.vmem %s3, %s333
      // Predicated region
      $region33: #{sppf_forward.3} parent=31 // pred_check
        %p335 = pneg %p116
      $region34: #{sppf_forward.3} parent=31 // pred_check_branch
        %337 = sbr.rel (%p335) target = $region36
      $region35: #{sppf_forward.3} parent=31 // pred_region
        %s338 = smul.u32 2, %s19
      $region36: #{sppf_forward.3} parent=31 // pred_fallthru
        _
    $region32: #{sppf_forward.3} parent=5 // pred_fallthru
      _
    %p339 = scmp.le.s32.totalorder 2, %s9
    // Predicated region
    $region37: #{sppf_forward.3} parent=5 // pred_check
      %p340 = pneg %p339
    $region38: #{sppf_forward.3} parent=5 // pred_check_branch
      %342 = sbr.rel (%p340) target = $region40
    $region39: #{sppf_forward.3} parent=5 // pred_region
      %s343 = ssub.s32 %s9, 2
      // Predicated region
      $region41: #{sppf_forward.3} parent=39 // pred_check
        %p344 = pneg %p122
      $region42: #{sppf_forward.3} parent=39 // pred_check_branch
        %346 = sbr.rel (%p344) target = $region44
      $region43: #{sppf_forward.3} parent=39 // pred_region
        %s347 = smul.u32 2, %s21
        %p348 = scmp.lt.s32.totalorder %s20, 1
        %s349 = scalar_select %p348, %s20, 1
        %p350 = scmp.lt.s32.totalorder %s347, 1
        %s351 = scalar_select %p350, %s347, 1
        %s352 = smul.addr %s349, 2
        %s353 = sadd.s32 %s351, %s352
        %s354 = smul.addr %s353, 2
        %s355 = scalar_lea.vmem %s3, %s354
      $region44: #{sppf_forward.3} parent=39 // pred_fallthru
        _
    $region40: #{sppf_forward.3} parent=5 // pred_fallthru
      _
  $region6: #{sppf_forward.3} parent=0 // loop_footer
    %s13 = sadd.s32 1, %s9
  $region7: #{sppf_forward.3} parent=0 // loop_footer_branch
    %8 = sbr.rel target = $region3
  $region8: #{sppf_forward.3} parent=0 // loop_exit
    _

// kernel: sppf_forward.5
$region0: #{sppf_forward.5}
  #allocation0 [shape = 'u32[]', space=smem, size = 0x4, offset = 0x4, fixed_abs, tag = 'smem constant byte address 0x4 - core index']
  #allocation1 [shape = 'u32[144,128]{1,0:T(1,128)}', space=vmem, size = 0x12000, scoped, tag = 'internal scratch']
  %s0 = inlined_call_operand.vmem [shape: f32[2,2,256], index: 0, kind: input, shape index: {}]
  %s1 = inlined_call_operand.vmem [shape: f32[2,2,256], index: 1, kind: input, shape index: {}]
  %s2 = inlined_call_operand.vmem [shape: f32[2,2,256], index: 2, kind: input, shape index: {}]
  %s3 = inlined_call_operand.vmem [shape: f32[2,2,256], index: 3, kind: input, shape index: {}]
  %s4 = inlined_call_operand.vmem [shape: f32[8,2], index: 4, kind: input, shape index: {}]
  %s5 = inlined_call_operand.vmem [shape: f32[8,2], index: 5, kind: input, shape index: {}]
  %s6 = inlined_call_operand.vmem [shape: f32[8,2], index: 6, kind: input, shape index: {}]
  %s7 = inlined_call_operand.vmem [shape: f32[8,2], index: 7, kind: input, shape index: {}]
  %s8 = inlined_call_operand.vmem [shape: f32[8,1], index: 8, kind: input, shape index: {}]
  %s9 = inlined_call_operand.vmem [shape: f32[2,8,256], index: 9, kind: output, shape index: {}]
  %s10 = sld [smem:[#allocation0]]
  $region69: #{sppf_forward.5} parent=0
    _
  %s12 = ssub.s32 1, %s10
  %s13 = scalar_select 0, %s12, %s10
  loop: start=0, step=1, limit=4
  $region2: #{sppf_forward.5} parent=0 // loop_pre_header
    _
  $region3: #{sppf_forward.5} parent=0 // loop_header
    %s15 = sphi 0, %s19
    %p16 = scmp.ge.s32.totalorder %s15, 4
    %s22 = sphi 0, %s34
    %s23 = sphi 0, %s30
    %s24 = sphi 0, %s22
    %s25 = sphi 0, %s23
    %s26 = sphi 0, %s24
    %s27 = sphi 0, %s25
    %s39 = sphi 0, %s41
    %s42 = sphi 0, %s39
    %s43 = sphi 0, %s42
    %s59 = sphi 0, %s43
    %s67 = sphi 0, %s69
    %s70 = sphi 0, %s67
    %s71 = sphi 0, %s70
    %s87 = sphi 0, %s71
    %s95 = sphi 0, %s97
    %s98 = sphi 0, %s95
    %s99 = sphi 0, %s98
    %s115 = sphi 0, %s99
    %s123 = sphi 0, %s125
    %s126 = sphi 0, %s123
    %s127 = sphi 0, %s126
    %s143 = sphi 0, %s127
    %s147 = sphi 0, %s147
    %s149 = sphi 0, %s147
    %s150 = sphi 0, %s149
    %s164 = sphi 0, %s150
    %s168 = sphi 0, %s168
    %s170 = sphi 0, %s168
    %s171 = sphi 0, %s170
    %s185 = sphi 0, %s171
    %s189 = sphi 0, %s189
    %s191 = sphi 0, %s189
    %s192 = sphi 0, %s191
    %s206 = sphi 0, %s192
    %s210 = sphi 0, %s210
    %s212 = sphi 0, %s210
    %s213 = sphi 0, %s212
    %s227 = sphi 0, %s213
    %s231 = sphi 0, %s231
    %s233 = sphi 0, %s231
    %s234 = sphi 0, %s233
    %s248 = sphi 0, %s234
    %s256 = sphi 0, %s258
    %s259 = sphi 0, %s256
    %s260 = sphi 0, %s259
    %s276 = sphi 0, %s260
  $region4: #{sppf_forward.5} parent=0 // loop_header_branch
    %18 = sbr.rel (%p16) target = $region8
  $region5: #{sppf_forward.5} parent=0 // loop_body
    %s20 = ssub.s32 %s15, 1
    %s21 = ssub.s32 %s15, 2
    %s28 = sadd.s32 1, %s23
    %p29 = scmp.ge.s32.totalorder %s28, 1
    %s30 = scalar_select %p29, 0, %s28
    %s31 = sadd.s32 1, %s22
    %s32 = scalar_select %p29, %s31, %s22
    %p33 = scmp.ge.s32.totalorder %s32, 2
    %s34 = scalar_select %p33, 0, %s32
    %s35 = ssub.s32 %s22, %s34
    %s36 = ssub.s32 %s23, %s30
    %s37 = sor.u32 %s35, %s36
    %p38 = scmp.eq.s32.totalorder %s37, 0
    %s40 = sadd.s32 %s39, 1
    %s41 = scalar_select %p38, %s39, %s40
    %p44 = pneg %p38
    %p45 = scmp.eq.s32.totalorder %s15, 1
    %p46 = por %p44, %p45
    %p47 = scmp.ne.s32.totalorder %s39, %s42
    %p48 = scmp.eq.s32.totalorder %s15, 0
    %p49 = por %p47, %p48
    %p50 = scmp.ne.s32.totalorder %s39, %s42
    %p51 = scmp.eq.s32.totalorder %s20, 1
    %p52 = por %p50, %p51
    %p53 = scmp.ne.s32.totalorder %s42, %s43
    %p54 = scmp.eq.s32.totalorder %s20, 0
    %p55 = por %p53, %p54
    %p56 = scmp.ne.s32.totalorder %s42, %s43
    %p57 = scmp.eq.s32.totalorder %s21, 1
    %p58 = por %p56, %p57
    %p60 = scmp.ne.s32.totalorder %s43, %s59
    %p61 = scmp.eq.s32.totalorder %s21, 0
    %p62 = por %p60, %p61
    %s63 = ssub.s32 %s22, %s34
    %s64 = ssub.s32 %s23, %s30
    %s65 = sor.u32 %s63, %s64
    %p66 = scmp.eq.s32.totalorder %s65, 0
    %s68 = sadd.s32 %s67, 1
    %s69 = scalar_select %p66, %s67, %s68
    %p72 = pneg %p66
    %p73 = scmp.eq.s32.totalorder %s15, 1
    %p74 = por %p72, %p73
    %p75 = scmp.ne.s32.totalorder %s67, %s70
    %p76 = scmp.eq.s32.totalorder %s15, 0
    %p77 = por %p75, %p76
    %p78 = scmp.ne.s32.totalorder %s67, %s70
    %p79 = scmp.eq.s32.totalorder %s20, 1
    %p80 = por %p78, %p79
    %p81 = scmp.ne.s32.totalorder %s70, %s71
    %p82 = scmp.eq.s32.totalorder %s20, 0
    %p83 = por %p81, %p82
    %p84 = scmp.ne.s32.totalorder %s70, %s71
    %p85 = scmp.eq.s32.totalorder %s21, 1
    %p86 = por %p84, %p85
    %p88 = scmp.ne.s32.totalorder %s71, %s87
    %p89 = scmp.eq.s32.totalorder %s21, 0
    %p90 = por %p88, %p89
    %s91 = ssub.s32 %s22, %s34
    %s92 = ssub.s32 %s23, %s30
    %s93 = sor.u32 %s91, %s92
    %p94 = scmp.eq.s32.totalorder %s93, 0
    %s96 = sadd.s32 %s95, 1
    %s97 = scalar_select %p94, %s95, %s96
    %p100 = pneg %p94
    %p101 = scmp.eq.s32.totalorder %s15, 1
    %p102 = por %p100, %p101
    %p103 = scmp.ne.s32.totalorder %s95, %s98
    %p104 = scmp.eq.s32.totalorder %s15, 0
    %p105 = por %p103, %p104
    %p106 = scmp.ne.s32.totalorder %s95, %s98
    %p107 = scmp.eq.s32.totalorder %s20, 1
    %p108 = por %p106, %p107
    %p109 = scmp.ne.s32.totalorder %s98, %s99
    %p110 = scmp.eq.s32.totalorder %s20, 0
    %p111 = por %p109, %p110
    %p112 = scmp.ne.s32.totalorder %s98, %s99
    %p113 = scmp.eq.s32.totalorder %s21, 1
    %p114 = por %p112, %p113
    %p116 = scmp.ne.s32.totalorder %s99, %s115
    %p117 = scmp.eq.s32.totalorder %s21, 0
    %p118 = por %p116, %p117
    %s119 = ssub.s32 %s22, %s34
    %s120 = ssub.s32 %s23, %s30
    %s121 = sor.u32 %s119, %s120
    %p122 = scmp.eq.s32.totalorder %s121, 0
    %s124 = sadd.s32 %s123, 1
    %s125 = scalar_select %p122, %s123, %s124
    %p128 = pneg %p122
    %p129 = scmp.eq.s32.totalorder %s15, 1
    %p130 = por %p128, %p129
    %p131 = scmp.ne.s32.totalorder %s123, %s126
    %p132 = scmp.eq.s32.totalorder %s15, 0
    %p133 = por %p131, %p132
    %p134 = scmp.ne.s32.totalorder %s123, %s126
    %p135 = scmp.eq.s32.totalorder %s20, 1
    %p136 = por %p134, %p135
    %p137 = scmp.ne.s32.totalorder %s126, %s127
    %p138 = scmp.eq.s32.totalorder %s20, 0
    %p139 = por %p137, %p138
    %p140 = scmp.ne.s32.totalorder %s126, %s127
    %p141 = scmp.eq.s32.totalorder %s21, 1
    %p142 = por %p140, %p141
    %p144 = scmp.ne.s32.totalorder %s127, %s143
    %p145 = scmp.eq.s32.totalorder %s21, 0
    %p146 = por %p144, %p145
    %s148 = sadd.s32 %s147, 1
    %p151 = scmp.eq.s32.totalorder %s15, 1
    %p152 = scmp.ne.s32.totalorder %s147, %s149
    %p153 = scmp.eq.s32.totalorder %s15, 0
    %p154 = por %p152, %p153
    %p155 = scmp.ne.s32.totalorder %s147, %s149
    %p156 = scmp.eq.s32.totalorder %s20, 1
    %p157 = por %p155, %p156
    %p158 = scmp.ne.s32.totalorder %s149, %s150
    %p159 = scmp.eq.s32.totalorder %s20, 0
    %p160 = por %p158, %p159
    %p161 = scmp.ne.s32.totalorder %s149, %s150
    %p162 = scmp.eq.s32.totalorder %s21, 1
    %p163 = por %p161, %p162
    %p165 = scmp.ne.s32.totalorder %s150, %s164
    %p166 = scmp.eq.s32.totalorder %s21, 0
    %p167 = por %p165, %p166
    %s169 = sadd.s32 %s168, 1
    %p172 = scmp.eq.s32.totalorder %s15, 1
    %p173 = scmp.ne.s32.totalorder %s168, %s170
    %p174 = scmp.eq.s32.totalorder %s15, 0
    %p175 = por %p173, %p174
    %p176 = scmp.ne.s32.totalorder %s168, %s170
    %p177 = scmp.eq.s32.totalorder %s20, 1
    %p178 = por %p176, %p177
    %p179 = scmp.ne.s32.totalorder %s170, %s171
    %p180 = scmp.eq.s32.totalorder %s20, 0
    %p181 = por %p179, %p180
    %p182 = scmp.ne.s32.totalorder %s170, %s171
    %p183 = scmp.eq.s32.totalorder %s21, 1
    %p184 = por %p182, %p183
    %p186 = scmp.ne.s32.totalorder %s171, %s185
    %p187 = scmp.eq.s32.totalorder %s21, 0
    %p188 = por %p186, %p187
    %s190 = sadd.s32 %s189, 1
    %p193 = scmp.eq.s32.totalorder %s15, 1
    %p194 = scmp.ne.s32.totalorder %s189, %s191
    %p195 = scmp.eq.s32.totalorder %s15, 0
    %p196 = por %p194, %p195
    %p197 = scmp.ne.s32.totalorder %s189, %s191
    %p198 = scmp.eq.s32.totalorder %s20, 1
    %p199 = por %p197, %p198
    %p200 = scmp.ne.s32.totalorder %s191, %s192
    %p201 = scmp.eq.s32.totalorder %s20, 0
    %p202 = por %p200, %p201
    %p203 = scmp.ne.s32.totalorder %s191, %s192
    %p204 = scmp.eq.s32.totalorder %s21, 1
    %p205 = por %p203, %p204
    %p207 = scmp.ne.s32.totalorder %s192, %s206
    %p208 = scmp.eq.s32.totalorder %s21, 0
    %p209 = por %p207, %p208
    %s211 = sadd.s32 %s210, 1
    %p214 = scmp.eq.s32.totalorder %s15, 1
    %p215 = scmp.ne.s32.totalorder %s210, %s212
    %p216 = scmp.eq.s32.totalorder %s15, 0
    %p217 = por %p215, %p216
    %p218 = scmp.ne.s32.totalorder %s210, %s212
    %p219 = scmp.eq.s32.totalorder %s20, 1
    %p220 = por %p218, %p219
    %p221 = scmp.ne.s32.totalorder %s212, %s213
    %p222 = scmp.eq.s32.totalorder %s20, 0
    %p223 = por %p221, %p222
    %p224 = scmp.ne.s32.totalorder %s212, %s213
    %p225 = scmp.eq.s32.totalorder %s21, 1
    %p226 = por %p224, %p225
    %p228 = scmp.ne.s32.totalorder %s213, %s227
    %p229 = scmp.eq.s32.totalorder %s21, 0
    %p230 = por %p228, %p229
    %s232 = sadd.s32 %s231, 1
    %p235 = scmp.eq.s32.totalorder %s15, 1
    %p236 = scmp.ne.s32.totalorder %s231, %s233
    %p237 = scmp.eq.s32.totalorder %s15, 0
    %p238 = por %p236, %p237
    %p239 = scmp.ne.s32.totalorder %s231, %s233
    %p240 = scmp.eq.s32.totalorder %s20, 1
    %p241 = por %p239, %p240
    %p242 = scmp.ne.s32.totalorder %s233, %s234
    %p243 = scmp.eq.s32.totalorder %s20, 0
    %p244 = por %p242, %p243
    %p245 = scmp.ne.s32.totalorder %s233, %s234
    %p246 = scmp.eq.s32.totalorder %s21, 1
    %p247 = por %p245, %p246
    %p249 = scmp.ne.s32.totalorder %s234, %s248
    %p250 = scmp.eq.s32.totalorder %s21, 0
    %p251 = por %p249, %p250
    %s252 = ssub.s32 %s22, %s34
    %s253 = ssub.s32 %s23, %s30
    %s254 = sor.u32 %s252, %s253
    %p255 = scmp.eq.s32.totalorder %s254, 0
    %s257 = sadd.s32 %s256, 1
    %s258 = scalar_select %p255, %s256, %s257
    %p261 = pneg %p255
    %p262 = scmp.eq.s32.totalorder %s15, 1
    %p263 = por %p261, %p262
    %p264 = scmp.ne.s32.totalorder %s256, %s259
    %p265 = scmp.eq.s32.totalorder %s15, 0
    %p266 = por %p264, %p265
    %p267 = scmp.ne.s32.totalorder %s256, %s259
    %p268 = scmp.eq.s32.totalorder %s20, 1
    %p269 = por %p267, %p268
    %p270 = scmp.ne.s32.totalorder %s259, %s260
    %p271 = scmp.eq.s32.totalorder %s20, 0
    %p272 = por %p270, %p271
    %p273 = scmp.ne.s32.totalorder %s259, %s260
    %p274 = scmp.eq.s32.totalorder %s21, 1
    %p275 = por %p273, %p274
    %p277 = scmp.ne.s32.totalorder %s260, %s276
    %p278 = scmp.eq.s32.totalorder %s21, 0
    %p279 = por %p277, %p278
    %p280 = scmp.le.s32.totalorder 1, %s15
    %p281 = scmp.lt.s32.totalorder %s15, 3
    %p282 = pnand %p280, %p281
    %p283 = pneg %p282
    // Predicated region
    $region9: #{sppf_forward.5} parent=5 // pred_check
      _
    $region10: #{sppf_forward.5} parent=5 // pred_check_branch
      %285 = sbr.rel (%p282) target = $region12
    $region11: #{sppf_forward.5} parent=5 // pred_region
      %s286 = ssub.s32 %s15, 1
      // Predicated region
      $region13: #{sppf_forward.5} parent=11 // pred_check
        %p287 = pneg %p160
      $region14: #{sppf_forward.5} parent=11 // pred_check_branch
        %289 = sbr.rel (%p287) target = $region16
      $region15: #{sppf_forward.5} parent=11 // pred_region
        _
      $region16: #{sppf_forward.5} parent=11 // pred_fallthru
        _
      // Predicated region
      $region17: #{sppf_forward.5} parent=11 // pred_check
        %p290 = pneg %p181
      $region18: #{sppf_forward.5} parent=11 // pred_check_branch
        %292 = sbr.rel (%p290) target = $region20
      $region19: #{sppf_forward.5} parent=11 // pred_region
        _
      $region20: #{sppf_forward.5} parent=11 // pred_fallthru
        _
      // Predicated region
      $region21: #{sppf_forward.5} parent=11 // pred_check
        %p293 = pneg %p202
      $region22: #{sppf_forward.5} parent=11 // pred_check_branch
        %295 = sbr.rel (%p293) target = $region24
      $region23: #{sppf_forward.5} parent=11 // pred_region
        _
      $region24: #{sppf_forward.5} parent=11 // pred_fallthru
        _
      // Predicated region
      $region25: #{sppf_forward.5} parent=11 // pred_check
        %p296 = pneg %p223
      $region26: #{sppf_forward.5} parent=11 // pred_check_branch
        %298 = sbr.rel (%p296) target = $region28
      $region27: #{sppf_forward.5} parent=11 // pred_region
        _
      $region28: #{sppf_forward.5} parent=11 // pred_fallthru
        _
      // Predicated region
      $region29: #{sppf_forward.5} parent=11 // pred_check
        %p299 = pneg %p244
      $region30: #{sppf_forward.5} parent=11 // pred_check_branch
        %301 = sbr.rel (%p299) target = $region32
      $region31: #{sppf_forward.5} parent=11 // pred_region
        _
      $region32: #{sppf_forward.5} parent=11 // pred_fallthru
        _
    $region12: #{sppf_forward.5} parent=5 // pred_fallthru
      _
    %p302 = scmp.lt.s32.totalorder %s15, 2
    // Predicated region
    $region33: #{sppf_forward.5} parent=5 // pred_check
      %p303 = pneg %p302
    $region34: #{sppf_forward.5} parent=5 // pred_check_branch
      %305 = sbr.rel (%p303) target = $region36
    $region35: #{sppf_forward.5} parent=5 // pred_region
      // Predicated region
      $region37: #{sppf_forward.5} parent=35 // pred_check
        %p306 = pneg %p49
      $region38: #{sppf_forward.5} parent=35 // pred_check_branch
        %308 = sbr.rel (%p306) target = $region40
      $region39: #{sppf_forward.5} parent=35 // pred_region
        %s309 = smul.u32 2, %s23
        %p310 = scmp.lt.s32.totalorder %s22, 1
        %s311 = scalar_select %p310, %s22, 1
        %p312 = scmp.lt.s32.totalorder %s309, 1
        %s313 = scalar_select %p312, %s309, 1
        %s314 = smul.addr %s311, 2
        %s315 = sadd.s32 %s313, %s314
        %s316 = smul.addr %s315, 2
        %s317 = scalar_lea.vmem %s0, %s316
        %s318 = smul.u32 2, %s23
      $region40: #{sppf_forward.5} parent=35 // pred_fallthru
        _
      // Predicated region
      $region41: #{sppf_forward.5} parent=35 // pred_check
        %p319 = pneg %p77
      $region42: #{sppf_forward.5} parent=35 // pred_check_branch
        %321 = sbr.rel (%p319) target = $region44
      $region43: #{sppf_forward.5} parent=35 // pred_region
        %s322 = smul.u32 2, %s23
        %p323 = scmp.lt.s32.totalorder %s22, 1
        %s324 = scalar_select %p323, %s22, 1
        %p325 = scmp.lt.s32.totalorder %s322, 1
        %s326 = scalar_select %p325, %s322, 1
        %s327 = smul.addr %s324, 2
        %s328 = sadd.s32 %s326, %s327
        %s329 = smul.addr %s328, 2
        %s330 = scalar_lea.vmem %s1, %s329
        %s331 = smul.u32 2, %s23
      $region44: #{sppf_forward.5} parent=35 // pred_fallthru
        _
      // Predicated region
      $region45: #{sppf_forward.5} parent=35 // pred_check
        %p332 = pneg %p105
      $region46: #{sppf_forward.5} parent=35 // pred_check_branch
        %334 = sbr.rel (%p332) target = $region48
      $region47: #{sppf_forward.5} parent=35 // pred_region
        %s335 = smul.u32 2, %s23
        %p336 = scmp.lt.s32.totalorder %s22, 1
        %s337 = scalar_select %p336, %s22, 1
        %p338 = scmp.lt.s32.totalorder %s335, 1
        %s339 = scalar_select %p338, %s335, 1
        %s340 = smul.addr %s337, 2
        %s341 = sadd.s32 %s339, %s340
        %s342 = smul.addr %s341, 2
        %s343 = scalar_lea.vmem %s2, %s342
        %s344 = smul.u32 2, %s23
      $region48: #{sppf_forward.5} parent=35 // pred_fallthru
        _
      // Predicated region
      $region49: #{sppf_forward.5} parent=35 // pred_check
        %p345 = pneg %p133
      $region50: #{sppf_forward.5} parent=35 // pred_check_branch
        %347 = sbr.rel (%p345) target = $region52
      $region51: #{sppf_forward.5} parent=35 // pred_region
        %s348 = smul.u32 2, %s23
        %p349 = scmp.lt.s32.totalorder %s22, 1
        %s350 = scalar_select %p349, %s22, 1
        %p351 = scmp.lt.s32.totalorder %s348, 1
        %s352 = scalar_select %p351, %s348, 1
        %s353 = smul.addr %s350, 2
        %s354 = sadd.s32 %s352, %s353
        %s355 = smul.addr %s354, 2
        %s356 = scalar_lea.vmem %s3, %s355
        %s357 = smul.u32 2, %s23
      $region52: #{sppf_forward.5} parent=35 // pred_fallthru
        _
    $region36: #{sppf_forward.5} parent=5 // pred_fallthru
      _
    %p358 = scmp.le.s32.totalorder 1, %s15
    %p359 = scmp.lt.s32.totalorder %s15, 3
    %p360 = pnand %p358, %p359
    %p361 = pneg %p360
    // Predicated region
    $region53: #{sppf_forward.5} parent=5 // pred_check
      _
    $region54: #{sppf_forward.5} parent=5 // pred_check_branch
      %363 = sbr.rel (%p360) target = $region56
    $region55: #{sppf_forward.5} parent=5 // pred_region
      %s364 = ssub.s32 %s15, 1
      %s365 = smul.u32 2, %s25
      %p366 = scmp.lt.s32.totalorder %s24, 1
      %s367 = scalar_select %p366, %s24, 1
      %p368 = scmp.lt.s32.totalorder %s365, 1
      %s369 = scalar_select %p368, %s365, 1
      %s370 = smul.addr %s367, 2
      %s371 = sadd.s32 %s369, %s370
      %s372 = smul.addr %s371, 2
      %s373 = scalar_lea.vmem %s0, %s372
      %p374 = pneg %p55
      %p375 = pneg %p52
      %s376 = smul.u32 2, %s25
      %p377 = scmp.lt.s32.totalorder %s24, 1
      %s378 = scalar_select %p377, %s24, 1
      %p379 = scmp.lt.s32.totalorder %s376, 1
      %s380 = scalar_select %p379, %s376, 1
      %s381 = smul.addr %s378, 2
      %s382 = sadd.s32 %s380, %s381
      %s383 = smul.addr %s382, 2
      %s384 = scalar_lea.vmem %s1, %s383
      %p385 = pneg %p83
      %p386 = pneg %p80
      %s387 = smul.u32 2, %s25
      %p388 = scmp.lt.s32.totalorder %s24, 1
      %s389 = scalar_select %p388, %s24, 1
      %p390 = scmp.lt.s32.totalorder %s387, 1
      %s391 = scalar_select %p390, %s387, 1
      %s392 = smul.addr %s389, 2
      %s393 = sadd.s32 %s391, %s392
      %s394 = smul.addr %s393, 2
      %s395 = scalar_lea.vmem %s2, %s394
      %p396 = pneg %p111
      %p397 = pneg %p108
      %s398 = smul.u32 2, %s25
      %p399 = scmp.lt.s32.totalorder %s24, 1
      %s400 = scalar_select %p399, %s24, 1
      %p401 = scmp.lt.s32.totalorder %s398, 1
      %s402 = scalar_select %p401, %s398, 1
      %s403 = smul.addr %s400, 2
      %s404 = sadd.s32 %s402, %s403
      %s405 = smul.addr %s404, 2
      %s406 = scalar_lea.vmem %s3, %s405
      %p407 = pneg %p139
      %p408 = pneg %p136
      %p409 = pneg %p160
      %p410 = pneg %p157
      %p411 = pneg %p181
      %p412 = pneg %p178
      %p413 = pneg %p202
      %p414 = pneg %p199
      %p415 = pneg %p223
      %p416 = pneg %p220
      %p417 = pneg %p244
      %p418 = pneg %p241
      %p419 = pneg %p272
      %p420 = pneg %p269
      %s421 = smul.u32 2, %s25
      %p422 = scmp.lt.s32.totalorder %s24, 1
      %s423 = scalar_select %p422, %s24, 1
      %p424 = scmp.lt.s32.totalorder %s421, 1
      %s425 = scalar_select %p424, %s421, 1
      %s426 = smul.addr %s423, 2
      %s427 = sadd.s32 %s425, %s426
      %s428 = smul.addr %s427, 8
      %s429 = scalar_lea.vmem %s9, %s428
      %s430 = smul.u32 2, %s25
      %p431 = scmp.lt.s32.totalorder %s24, 1
      %s432 = scalar_select %p431, %s24, 1
      %p433 = scmp.lt.s32.totalorder %s430, 1
      %s434 = scalar_select %p433, %s430, 1
      %s435 = smul.addr %s432, 2
      %s436 = sadd.s32 %s434, %s435
      %s437 = smul.addr %s436, 2
      %s438 = scalar_lea.vmem %s0, %s437
      %s439 = smul.u32 2, %s25
      %s440 = smul.u32 2, %s25
      %p441 = scmp.lt.s32.totalorder %s24, 1
      %s442 = scalar_select %p441, %s24, 1
      %p443 = scmp.lt.s32.totalorder %s440, 1
      %s444 = scalar_select %p443, %s440, 1
      %s445 = smul.addr %s442, 2
      %s446 = sadd.s32 %s444, %s445
      %s447 = smul.addr %s446, 2
      %s448 = scalar_lea.vmem %s1, %s447
      %s449 = smul.u32 2, %s25
      %s450 = smul.u32 2, %s25
      %p451 = scmp.lt.s32.totalorder %s24, 1
      %s452 = scalar_select %p451, %s24, 1
      %p453 = scmp.lt.s32.totalorder %s450, 1
      %s454 = scalar_select %p453, %s450, 1
      %s455 = smul.addr %s452, 2
      %s456 = sadd.s32 %s454, %s455
      %s457 = smul.addr %s456, 2
      %s458 = scalar_lea.vmem %s2, %s457
      %s459 = smul.u32 2, %s25
      %s460 = smul.u32 2, %s25
      %p461 = scmp.lt.s32.totalorder %s24, 1
      %s462 = scalar_select %p461, %s24, 1
      %p463 = scmp.lt.s32.totalorder %s460, 1
      %s464 = scalar_select %p463, %s460, 1
      %s465 = smul.addr %s462, 2
      %s466 = sadd.s32 %s464, %s465
      %s467 = smul.addr %s466, 2
      %s468 = scalar_lea.vmem %s3, %s467
      %s469 = smul.u32 2, %s25
      %s470 = smul.u32 2, %s25
      %p471 = scmp.lt.s32.totalorder %s24, 1
      %s472 = scalar_select %p471, %s24, 1
      %p473 = scmp.lt.s32.totalorder %s470, 1
      %s474 = scalar_select %p473, %s470, 1
      %s475 = smul.addr %s472, 2
      %s476 = sadd.s32 %s474, %s475
      %s477 = smul.addr %s476, 8
      %s478 = scalar_lea.vmem %s9, %s477
      %s479 = smul.u32 2, %s25
      %v480 = vld [vmem:[%s438] sm:$0xf]
      %v481 = vld [vmem:[%s4] sm:$0xff]
      %v482 = vld [vmem:[%s448] sm:$0xf]
      %v483 = vld [vmem:[%s5] sm:$0xff]
      %v486 = vunpack.c.l.s4 1983009808
      %v487 = vunpack.c.0.s8 %v486
      %v488 = vlaneseq
      %v489 = vshrl.u32 %v488, 7
      %v490 = vsub.s32 %v487, %v489
      %v491 = vrot.slane %v482, %v490
      %v492 = vcombine.high %v491, %v491
      %vm493 = vcmask 15360
      %v495 = vsel %vm493, %v483, 0
      %vm497 = vcmask 1041408
      %v498 = vsel %vm497, %v491, 0
      %v500 = vsel %vm497, %v492, 0
      %502 = vmatprep.subr.mxu0 %v500
      %503 = vmatpush1.msra.mxu0 %v498
      %504 = vmatprep.subr.mxu0 0.0
      %505 = vmatpush1.msra.mxu0 0.0
      %506 = vmatprep.subr.mxu0 0.0
      %507 = vmatpush1.msra.mxu0 0.0
      %508 = vmatprep.subr.mxu0 0.0
      %509 = vmatpush1.msra.mxu0 0.0
      %510 = vmatprep.subr.mxu0 0.0
      %511 = vmatpush1.msra.mxu0 0.0
      %512 = vmatprep.subr.mxu0 0.0
      %513 = vmatpush1.msra.mxu0 0.0
      %514 = vmatprep.subr.mxu0 0.0
      %515 = vmatpush1.msra.mxu0 0.0
      %516 = vmatprep.subr.mxu0 0.0
      %517 = vmatpush1.msra.mxu0 0.0
      %518 = vmatprep.subr.mxu0 0.0
      %519 = vmatpush1.msra.mxu0 0.0
      %520 = vmatprep.subr.mxu0 0.0
      %521 = vmatpush1.msra.mxu0 0.0
      %522 = vmatprep.subr.mxu0 0.0
      %523 = vmatpush1.msra.mxu0 0.0
      %524 = vmatprep.subr.mxu0 0.0
      %525 = vmatpush1.msra.mxu0 0.0
      %526 = vmatprep.subr.mxu0 0.0
      %527 = vmatpush1.msra.mxu0 0.0
      %528 = vmatprep.subr.mxu0 0.0
      %529 = vmatpush1.msra.mxu0 0.0
      %530 = vmatprep.subr.mxu0 0.0
      %531 = vmatpush1.msra.mxu0 0.0
      %532 = vmatprep.subr.mxu0 0.0
      %533 = vmatpush1.msra.mxu0 0.0
      %534 = vmatprep.subr.mxu0 0.0
      %535 = vmatpush1.msra.mxu0 0.0
      %536 = vmatprep.subr.mxu0 0.0
      %537 = vmatpush1.msra.mxu0 0.0
      %538 = vmatprep.subr.mxu0 0.0
      %539 = vmatpush1.msra.mxu0 0.0
      %540 = vmatprep.subr.mxu0 0.0
      %541 = vmatpush1.msra.mxu0 0.0
      %542 = vmatprep.subr.mxu0 0.0
      %543 = vmatpush1.msra.mxu0 0.0
      %544 = vmatprep.subr.mxu0 0.0
      %545 = vmatpush1.msra.mxu0 0.0
      %546 = vmatprep.subr.mxu0 0.0
      %547 = vmatpush1.msra.mxu0 0.0
      %548 = vmatprep.subr.mxu0 0.0
      %549 = vmatpush1.msra.mxu0 0.0
      %550 = vmatprep.subr.mxu0 0.0
      %551 = vmatpush1.msra.mxu0 0.0
      %552 = vmatprep.subr.mxu0 0.0
      %553 = vmatpush1.msra.mxu0 0.0
      %554 = vmatprep.subr.mxu0 0.0
      %555 = vmatpush1.msra.mxu0 0.0
      %556 = vmatprep.subr.mxu0 0.0
      %557 = vmatpush1.msra.mxu0 0.0
      %558 = vmatprep.subr.mxu0 0.0
      %559 = vmatpush1.msra.mxu0 0.0
      %560 = vmatprep.subr.mxu0 0.0
      %561 = vmatpush1.msra.mxu0 0.0
      %562 = vmatprep.subr.mxu0 0.0
      %563 = vmatpush1.msra.mxu0 0.0
      %564 = vmatprep.subr.mxu0 0.0
      %565 = vmatpush1.msra.mxu0 0.0
      %566 = vmatprep.mubr.f32.mxu0 0.0
      %567 = vmatmul.mubr.f32.gmra.mrb[0].mxu0 %v495
      %v568 = vpop.f32.mrb[0].mxu0
      %v569 = vadd.f32 0.0, %v568
      %v570 = vpop.f32.mrb[0].mxu0
      %v571 = vadd.f32 0.0, %v570
      %572 = vdwg.mxu0
      %v575 = vunpack.c.l.s4 1983009808
      %v576 = vunpack.c.0.s8 %v575
      %v577 = vlaneseq
      %v578 = vshrl.u32 %v577, 7
      %v579 = vsub.s32 %v576, %v578
      %v580 = vrot.slane %v480, %v579
      %v581 = vcombine.high %v580, %v580
      %v583 = vsel %vm493, %v481, 0
      %v585 = vsel %vm497, %v580, 0
      %v587 = vsel %vm497, %v581, 0
      %589 = vmatprep.subr.mxu0 %v587
      %590 = vmatpush1.msra.mxu0 %v585
      %591 = vmatprep.subr.mxu0 0.0
      %592 = vmatpush1.msra.mxu0 0.0
      %593 = vmatprep.subr.mxu0 0.0
      %594 = vmatpush1.msra.mxu0 0.0
      %595 = vmatprep.subr.mxu0 0.0
      %596 = vmatpush1.msra.mxu0 0.0
      %597 = vmatprep.subr.mxu0 0.0
      %598 = vmatpush1.msra.mxu0 0.0
      %599 = vmatprep.subr.mxu0 0.0
      %600 = vmatpush1.msra.mxu0 0.0
      %601 = vmatprep.subr.mxu0 0.0
      %602 = vmatpush1.msra.mxu0 0.0
      %603 = vmatprep.subr.mxu0 0.0
      %604 = vmatpush1.msra.mxu0 0.0
      %605 = vmatprep.subr.mxu0 0.0
      %606 = vmatpush1.msra.mxu0 0.0
      %607 = vmatprep.subr.mxu0 0.0
      %608 = vmatpush1.msra.mxu0 0.0
      %609 = vmatprep.subr.mxu0 0.0
      %610 = vmatpush1.msra.mxu0 0.0
      %611 = vmatprep.subr.mxu0 0.0
      %612 = vmatpush1.msra.mxu0 0.0
      %613 = vmatprep.subr.mxu0 0.0
      %614 = vmatpush1.msra.mxu0 0.0
      %615 = vmatprep.subr.mxu0 0.0
      %616 = vmatpush1.msra.mxu0 0.0
      %617 = vmatprep.subr.mxu0 0.0
      %618 = vmatpush1.msra.mxu0 0.0
      %619 = vmatprep.subr.mxu0 0.0
      %620 = vmatpush1.msra.mxu0 0.0
      %621 = vmatprep.subr.mxu0 0.0
      %622 = vmatpush1.msra.mxu0 0.0
      %623 = vmatprep.subr.mxu0 0.0
      %624 = vmatpush1.msra.mxu0 0.0
      %625 = vmatprep.subr.mxu0 0.0
      %626 = vmatpush1.msra.mxu0 0.0
      %627 = vmatprep.subr.mxu0 0.0
      %628 = vmatpush1.msra.mxu0 0.0
      %629 = vmatprep.subr.mxu0 0.0
      %630 = vmatpush1.msra.mxu0 0.0
      %631 = vmatprep.subr.mxu0 0.0
      %632 = vmatpush1.msra.mxu0 0.0
      %633 = vmatprep.subr.mxu0 0.0
      %634 = vmatpush1.msra.mxu0 0.0
      %635 = vmatprep.subr.mxu0 0.0
      %636 = vmatpush1.msra.mxu0 0.0
      %637 = vmatprep.subr.mxu0 0.0
      %638 = vmatpush1.msra.mxu0 0.0
      %639 = vmatprep.subr.mxu0 0.0
      %640 = vmatpush1.msra.mxu0 0.0
      %641 = vmatprep.subr.mxu0 0.0
      %642 = vmatpush1.msra.mxu0 0.0
      %643 = vmatprep.subr.mxu0 0.0
      %644 = vmatpush1.msra.mxu0 0.0
      %645 = vmatprep.subr.mxu0 0.0
      %646 = vmatpush1.msra.mxu0 0.0
      %647 = vmatprep.subr.mxu0 0.0
      %648 = vmatpush1.msra.mxu0 0.0
      %649 = vmatprep.subr.mxu0 0.0
      %650 = vmatpush1.msra.mxu0 0.0
      %651 = vmatprep.subr.mxu0 0.0
      %652 = vmatpush1.msra.mxu0 0.0
      %653 = vmatprep.mubr.f32.mxu0 0.0
      %654 = vmatmul.mubr.f32.gmra.mrb[0].mxu0 %v583
      %v655 = vpop.f32.mrb[0].mxu0
      %v656 = vadd.f32 %v569, %v655
      %v657 = vpop.f32.mrb[0].mxu0
      %v658 = vadd.f32 %v571, %v657
      %659 = vdwg.mxu0
      %v660 = vld [vmem:[%s458] sm:$0xf]
      %v661 = vld [vmem:[%s6] sm:$0xff]
      %v664 = vunpack.c.l.s4 1983009808
      %v665 = vunpack.c.0.s8 %v664
      %v666 = vlaneseq
      %v667 = vshrl.u32 %v666, 7
      %v668 = vsub.s32 %v665, %v667
      %v669 = vrot.slane %v660, %v668
      %v670 = vcombine.high %v669, %v669
      %v672 = vsel %vm493, %v661, 0
      %v674 = vsel %vm497, %v669, 0
      %v676 = vsel %vm497, %v670, 0
      %678 = vmatprep.subr.mxu0 %v676
      %679 = vmatpush1.msra.mxu0 %v674
      %680 = vmatprep.subr.mxu0 0.0
      %681 = vmatpush1.msra.mxu0 0.0
      %682 = vmatprep.subr.mxu0 0.0
      %683 = vmatpush1.msra.mxu0 0.0
      %684 = vmatprep.subr.mxu0 0.0
      %685 = vmatpush1.msra.mxu0 0.0
      %686 = vmatprep.subr.mxu0 0.0
      %687 = vmatpush1.msra.mxu0 0.0
      %688 = vmatprep.subr.mxu0 0.0
      %689 = vmatpush1.msra.mxu0 0.0
      %690 = vmatprep.subr.mxu0 0.0
      %691 = vmatpush1.msra.mxu0 0.0
      %692 = vmatprep.subr.mxu0 0.0
      %693 = vmatpush1.msra.mxu0 0.0
      %694 = vmatprep.subr.mxu0 0.0
      %695 = vmatpush1.msra.mxu0 0.0
      %696 = vmatprep.subr.mxu0 0.0
      %697 = vmatpush1.msra.mxu0 0.0
      %698 = vmatprep.subr.mxu0 0.0
      %699 = vmatpush1.msra.mxu0 0.0
      %700 = vmatprep.subr.mxu0 0.0
      %701 = vmatpush1.msra.mxu0 0.0
      %702 = vmatprep.subr.mxu0 0.0
      %703 = vmatpush1.msra.mxu0 0.0
      %704 = vmatprep.subr.mxu0 0.0
      %705 = vmatpush1.msra.mxu0 0.0
      %706 = vmatprep.subr.mxu0 0.0
      %707 = vmatpush1.msra.mxu0 0.0
      %708 = vmatprep.subr.mxu0 0.0
      %709 = vmatpush1.msra.mxu0 0.0
      %710 = vmatprep.subr.mxu0 0.0
      %711 = vmatpush1.msra.mxu0 0.0
      %712 = vmatprep.subr.mxu0 0.0
      %713 = vmatpush1.msra.mxu0 0.0
      %714 = vmatprep.subr.mxu0 0.0
      %715 = vmatpush1.msra.mxu0 0.0
      %716 = vmatprep.subr.mxu0 0.0
      %717 = vmatpush1.msra.mxu0 0.0
      %718 = vmatprep.subr.mxu0 0.0
      %719 = vmatpush1.msra.mxu0 0.0
      %720 = vmatprep.subr.mxu0 0.0
      %721 = vmatpush1.msra.mxu0 0.0
      %722 = vmatprep.subr.mxu0 0.0
      %723 = vmatpush1.msra.mxu0 0.0
      %724 = vmatprep.subr.mxu0 0.0
      %725 = vmatpush1.msra.mxu0 0.0
      %726 = vmatprep.subr.mxu0 0.0
      %727 = vmatpush1.msra.mxu0 0.0
      %728 = vmatprep.subr.mxu0 0.0
      %729 = vmatpush1.msra.mxu0 0.0
      %730 = vmatprep.subr.mxu0 0.0
      %731 = vmatpush1.msra.mxu0 0.0
      %732 = vmatprep.subr.mxu0 0.0
      %733 = vmatpush1.msra.mxu0 0.0
      %734 = vmatprep.subr.mxu0 0.0
      %735 = vmatpush1.msra.mxu0 0.0
      %736 = vmatprep.subr.mxu0 0.0
      %737 = vmatpush1.msra.mxu0 0.0
      %738 = vmatprep.subr.mxu0 0.0
      %739 = vmatpush1.msra.mxu0 0.0
      %740 = vmatprep.subr.mxu0 0.0
      %741 = vmatpush1.msra.mxu0 0.0
      %742 = vmatprep.mubr.f32.mxu0 0.0
      %743 = vmatmul.mubr.f32.gmra.mrb[0].mxu0 %v672
      %v744 = vpop.f32.mrb[0].mxu0
      %v745 = vadd.f32 0.0, %v744
      %v746 = vpop.f32.mrb[0].mxu0
      %v747 = vadd.f32 0.0, %v746
      %748 = vdwg.mxu0
      %v749 = vadd.f32 %v656, %v745
      %v750 = vadd.f32 %v658, %v747
      %v751 = vld [vmem:[%s468] sm:$0xf]
      %v752 = vld [vmem:[%s7] sm:$0xff]
      %v755 = vunpack.c.l.s4 1983009808
      %v756 = vunpack.c.0.s8 %v755
      %v757 = vlaneseq
      %v758 = vshrl.u32 %v757, 7
      %v759 = vsub.s32 %v756, %v758
      %v760 = vrot.slane %v751, %v759
      %v761 = vcombine.high %v760, %v760
      %v763 = vsel %vm493, %v752, 0
      %v765 = vsel %vm497, %v760, 0
      %v767 = vsel %vm497, %v761, 0
      %769 = vmatprep.subr.mxu0 %v767
      %770 = vmatpush1.msra.mxu0 %v765
      %771 = vmatprep.subr.mxu0 0.0
      %772 = vmatpush1.msra.mxu0 0.0
      %773 = vmatprep.subr.mxu0 0.0
      %774 = vmatpush1.msra.mxu0 0.0
      %775 = vmatprep.subr.mxu0 0.0
      %776 = vmatpush1.msra.mxu0 0.0
      %777 = vmatprep.subr.mxu0 0.0
      %778 = vmatpush1.msra.mxu0 0.0
      %779 = vmatprep.subr.mxu0 0.0
      %780 = vmatpush1.msra.mxu0 0.0
      %781 = vmatprep.subr.mxu0 0.0
      %782 = vmatpush1.msra.mxu0 0.0
      %783 = vmatprep.subr.mxu0 0.0
      %784 = vmatpush1.msra.mxu0 0.0
      %785 = vmatprep.subr.mxu0 0.0
      %786 = vmatpush1.msra.mxu0 0.0
      %787 = vmatprep.subr.mxu0 0.0
      %788 = vmatpush1.msra.mxu0 0.0
      %789 = vmatprep.subr.mxu0 0.0
      %790 = vmatpush1.msra.mxu0 0.0
      %791 = vmatprep.subr.mxu0 0.0
      %792 = vmatpush1.msra.mxu0 0.0
      %793 = vmatprep.subr.mxu0 0.0
      %794 = vmatpush1.msra.mxu0 0.0
      %795 = vmatprep.subr.mxu0 0.0
      %796 = vmatpush1.msra.mxu0 0.0
      %797 = vmatprep.subr.mxu0 0.0
      %798 = vmatpush1.msra.mxu0 0.0
      %799 = vmatprep.subr.mxu0 0.0
      %800 = vmatpush1.msra.mxu0 0.0
      %801 = vmatprep.subr.mxu0 0.0
      %802 = vmatpush1.msra.mxu0 0.0
      %803 = vmatprep.subr.mxu0 0.0
      %804 = vmatpush1.msra.mxu0 0.0
      %805 = vmatprep.subr.mxu0 0.0
      %806 = vmatpush1.msra.mxu0 0.0
      %807 = vmatprep.subr.mxu0 0.0
      %808 = vmatpush1.msra.mxu0 0.0
      %809 = vmatprep.subr.mxu0 0.0
      %810 = vmatpush1.msra.mxu0 0.0
      %811 = vmatprep.subr.mxu0 0.0
      %812 = vmatpush1.msra.mxu0 0.0
      %813 = vmatprep.subr.mxu0 0.0
      %814 = vmatpush1.msra.mxu0 0.0
      %815 = vmatprep.subr.mxu0 0.0
      %816 = vmatpush1.msra.mxu0 0.0
      %817 = vmatprep.subr.mxu0 0.0
      %818 = vmatpush1.msra.mxu0 0.0
      %819 = vmatprep.subr.mxu0 0.0
      %820 = vmatpush1.msra.mxu0 0.0
      %821 = vmatprep.subr.mxu0 0.0
      %822 = vmatpush1.msra.mxu0 0.0
      %823 = vmatprep.subr.mxu0 0.0
      %824 = vmatpush1.msra.mxu0 0.0
      %825 = vmatprep.subr.mxu0 0.0
      %826 = vmatpush1.msra.mxu0 0.0
      %827 = vmatprep.subr.mxu0 0.0
      %828 = vmatpush1.msra.mxu0 0.0
      %829 = vmatprep.subr.mxu0 0.0
      %830 = vmatpush1.msra.mxu0 0.0
      %831 = vmatprep.subr.mxu0 0.0
      %832 = vmatpush1.msra.mxu0 0.0
      %833 = vmatprep.mubr.f32.mxu0 0.0
      %834 = vmatmul.mubr.f32.gmra.mrb[0].mxu0 %v763
      %v835 = vpop.f32.mrb[0].mxu0
      %v836 = vadd.f32 0.0, %v835
      %v837 = vpop.f32.mrb[0].mxu0
      %v838 = vadd.f32 0.0, %v837
      %839 = vdwg.mxu0
      %v840 = vadd.f32 %v749, %v836
      %v841 = vadd.f32 %v750, %v838
      %v842 = vld [vmem:[%s8] sm:$0xff]
      %844 = vset.pattern.permute.xlu0 0
      %845 = vperm.xlu0 %844, %v842
      %v846 = vpop.permute.xlu0 %845
      %v848 = vadd.f32 %v840, %v846
      %v849 = vadd.f32 %v841, %v846
      %v850 = vxor.u32 %v848, 2147483648
      %v851 = vxor.u32 %v849, 2147483648
      %v852 = vmul.f32 %v850, 1.442695
      %v853 = vpow.pop %v852
      %v854 = vmul.f32 %v851, 1.442695
      %v855 = vpow.pop %v854
      %v856 = vadd.f32 %v853, 1.0
      %v857 = vadd.f32 %v855, 1.0
      %v858 = vrcp.pop %v856
      %v859 = vmul.f32 1.0, %v858
      %v860 = vrcp.pop %v857
      %v861 = vmul.f32 1.0, %v860
      %v862 = vmul.f32 %v848, %v859
      %v863 = vmul.f32 %v849, %v861
      %864 = vst [vmem:[%s478] sm:$0xff] %v862
      %865 = vst [vmem:[%s478 + $0x8] sm:$0xff] %v863
      %s866 = smul.u32 2, %s25
      %p867 = scmp.lt.s32.totalorder %s24, 1
      %s868 = scalar_select %p867, %s24, 1
      %p869 = scmp.lt.s32.totalorder %s866, 1
      %s870 = scalar_select %p869, %s866, 1
      %s871 = smul.addr %s868, 2
      %s872 = sadd.s32 %s870, %s871
      %s873 = smul.addr %s872, 8
      %s874 = scalar_lea.vmem %s9, %s873
      // Predicated region
      $region57: #{sppf_forward.5} parent=55 // pred_check
        %p875 = pneg %p269
      $region58: #{sppf_forward.5} parent=55 // pred_check_branch
        %877 = sbr.rel (%p875) target = $region60
      $region59: #{sppf_forward.5} parent=55 // pred_region
        %s878 = smul.u32 2, %s25
      $region60: #{sppf_forward.5} parent=55 // pred_fallthru
        _
    $region56: #{sppf_forward.5} parent=5 // pred_fallthru
      _
    %p879 = scmp.le.s32.totalorder 2, %s15
    // Predicated region
    $region61: #{sppf_forward.5} parent=5 // pred_check
      %p880 = pneg %p879
    $region62: #{sppf_forward.5} parent=5 // pred_check_branch
      %882 = sbr.rel (%p880) target = $region64
    $region63: #{sppf_forward.5} parent=5 // pred_region
      %s883 = ssub.s32 %s15, 2
      // Predicated region
      $region65: #{sppf_forward.5} parent=63 // pred_check
        %p884 = pneg %p275
      $region66: #{sppf_forward.5} parent=63 // pred_check_branch
        %886 = sbr.rel (%p884) target = $region68
      $region67: #{sppf_forward.5} parent=63 // pred_region
        %s887 = smul.u32 2, %s27
        %p888 = scmp.lt.s32.totalorder %s26, 1
        %s889 = scalar_select %p888, %s26, 1
        %p890 = scmp.lt.s32.totalorder %s887, 1
        %s891 = scalar_select %p890, %s887, 1
        %s892 = smul.addr %s889, 2
        %s893 = sadd.s32 %s891, %s892
        %s894 = smul.addr %s893, 8
        %s895 = scalar_lea.vmem %s9, %s894
      $region68: #{sppf_forward.5} parent=63 // pred_fallthru
        _
    $region64: #{sppf_forward.5} parent=5 // pred_fallthru
      _
  $region6: #{sppf_forward.5} parent=0 // loop_footer
    %s19 = sadd.s32 1, %s15
  $region7: #{sppf_forward.5} parent=0 // loop_footer_branch
    %14 = sbr.rel target = $region3
  $region8: #{sppf_forward.5} parent=0 // loop_exit
    _

// kernel: sppf_forward.4
$region0: #{sppf_forward.4}
  #allocation0 [shape = 'u32[]', space=smem, size = 0x4, offset = 0x4, fixed_abs, tag = 'smem constant byte address 0x4 - core index']
  #allocation1 [shape = 'u32[144,128]{1,0:T(1,128)}', space=vmem, size = 0x12000, scoped, tag = 'internal scratch']
  #allocation2 [shape = 'f32[2,32,32]{2,1,0:T(8,128)}', space=vmem, size = 0x8000, scoped, tag = 'scratch operand']
  %s0 = inlined_call_operand.vmem [shape: f32[2,2,16,16], index: 0, kind: input, shape index: {}]
  %s1 = inlined_call_operand.vmem [shape: f32[2,2,16,16], index: 1, kind: output, shape index: {0}]
  %s2 = inlined_call_operand.vmem [shape: f32[2,2,16,16], index: 2, kind: output, shape index: {1}]
  %s3 = inlined_call_operand.vmem [shape: f32[2,2,16,16], index: 3, kind: output, shape index: {2}]
  %4 = xla_tuple %s1, %s2, %s3
  %s5 = sld [smem:[#allocation0]]
  $region53: #{sppf_forward.4} parent=0
    _
  %s7 = ssub.s32 1, %s5
  %s8 = scalar_select 0, %s7, %s5
  loop: start=0, step=1, limit=4
  $region2: #{sppf_forward.4} parent=0 // loop_pre_header
    _
  $region3: #{sppf_forward.4} parent=0 // loop_header
    %s10 = sphi 0, %s14
    %p11 = scmp.ge.s32.totalorder %s10, 4
    %s17 = sphi 0, %s29
    %s18 = sphi 0, %s25
    %s19 = sphi 0, %s17
    %s20 = sphi 0, %s18
    %s21 = sphi 0, %s19
    %s22 = sphi 0, %s20
    %s34 = sphi 0, %s36
    %s37 = sphi 0, %s34
    %s38 = sphi 0, %s37
    %s54 = sphi 0, %s38
    %s62 = sphi 0, %s64
    %s65 = sphi 0, %s62
    %s66 = sphi 0, %s65
    %s82 = sphi 0, %s66
    %s90 = sphi 0, %s92
    %s93 = sphi 0, %s90
    %s94 = sphi 0, %s93
    %s110 = sphi 0, %s94
    %s118 = sphi 0, %s120
    %s121 = sphi 0, %s118
    %s122 = sphi 0, %s121
    %s138 = sphi 0, %s122
  $region4: #{sppf_forward.4} parent=0 // loop_header_branch
    %13 = sbr.rel (%p11) target = $region8
  $region5: #{sppf_forward.4} parent=0 // loop_body
    %s15 = ssub.s32 %s10, 1
    %s16 = ssub.s32 %s10, 2
    %s23 = sadd.s32 1, %s18
    %p24 = scmp.ge.s32.totalorder %s23, 1
    %s25 = scalar_select %p24, 0, %s23
    %s26 = sadd.s32 1, %s17
    %s27 = scalar_select %p24, %s26, %s17
    %p28 = scmp.ge.s32.totalorder %s27, 2
    %s29 = scalar_select %p28, 0, %s27
    %s30 = ssub.s32 %s17, %s29
    %s31 = ssub.s32 %s18, %s25
    %s32 = sor.u32 %s30, %s31
    %p33 = scmp.eq.s32.totalorder %s32, 0
    %s35 = sadd.s32 %s34, 1
    %s36 = scalar_select %p33, %s34, %s35
    %p39 = pneg %p33
    %p40 = scmp.eq.s32.totalorder %s10, 1
    %p41 = por %p39, %p40
    %p42 = scmp.ne.s32.totalorder %s34, %s37
    %p43 = scmp.eq.s32.totalorder %s10, 0
    %p44 = por %p42, %p43
    %p45 = scmp.ne.s32.totalorder %s34, %s37
    %p46 = scmp.eq.s32.totalorder %s15, 1
    %p47 = por %p45, %p46
    %p48 = scmp.ne.s32.totalorder %s37, %s38
    %p49 = scmp.eq.s32.totalorder %s15, 0
    %p50 = por %p48, %p49
    %p51 = scmp.ne.s32.totalorder %s37, %s38
    %p52 = scmp.eq.s32.totalorder %s16, 1
    %p53 = por %p51, %p52
    %p55 = scmp.ne.s32.totalorder %s38, %s54
    %p56 = scmp.eq.s32.totalorder %s16, 0
    %p57 = por %p55, %p56
    %s58 = ssub.s32 %s17, %s29
    %s59 = ssub.s32 %s18, %s25
    %s60 = sor.u32 %s58, %s59
    %p61 = scmp.eq.s32.totalorder %s60, 0
    %s63 = sadd.s32 %s62, 1
    %s64 = scalar_select %p61, %s62, %s63
    %p67 = pneg %p61
    %p68 = scmp.eq.s32.totalorder %s10, 1
    %p69 = por %p67, %p68
    %p70 = scmp.ne.s32.totalorder %s62, %s65
    %p71 = scmp.eq.s32.totalorder %s10, 0
    %p72 = por %p70, %p71
    %p73 = scmp.ne.s32.totalorder %s62, %s65
    %p74 = scmp.eq.s32.totalorder %s15, 1
    %p75 = por %p73, %p74
    %p76 = scmp.ne.s32.totalorder %s65, %s66
    %p77 = scmp.eq.s32.totalorder %s15, 0
    %p78 = por %p76, %p77
    %p79 = scmp.ne.s32.totalorder %s65, %s66
    %p80 = scmp.eq.s32.totalorder %s16, 1
    %p81 = por %p79, %p80
    %p83 = scmp.ne.s32.totalorder %s66, %s82
    %p84 = scmp.eq.s32.totalorder %s16, 0
    %p85 = por %p83, %p84
    %s86 = ssub.s32 %s17, %s29
    %s87 = ssub.s32 %s18, %s25
    %s88 = sor.u32 %s86, %s87
    %p89 = scmp.eq.s32.totalorder %s88, 0
    %s91 = sadd.s32 %s90, 1
    %s92 = scalar_select %p89, %s90, %s91
    %p95 = pneg %p89
    %p96 = scmp.eq.s32.totalorder %s10, 1
    %p97 = por %p95, %p96
    %p98 = scmp.ne.s32.totalorder %s90, %s93
    %p99 = scmp.eq.s32.totalorder %s10, 0
    %p100 = por %p98, %p99
    %p101 = scmp.ne.s32.totalorder %s90, %s93
    %p102 = scmp.eq.s32.totalorder %s15, 1
    %p103 = por %p101, %p102
    %p104 = scmp.ne.s32.totalorder %s93, %s94
    %p105 = scmp.eq.s32.totalorder %s15, 0
    %p106 = por %p104, %p105
    %p107 = scmp.ne.s32.totalorder %s93, %s94
    %p108 = scmp.eq.s32.totalorder %s16, 1
    %p109 = por %p107, %p108
    %p111 = scmp.ne.s32.totalorder %s94, %s110
    %p112 = scmp.eq.s32.totalorder %s16, 0
    %p113 = por %p111, %p112
    %s114 = ssub.s32 %s17, %s29
    %s115 = ssub.s32 %s18, %s25
    %s116 = sor.u32 %s114, %s115
    %p117 = scmp.eq.s32.totalorder %s116, 0
    %s119 = sadd.s32 %s118, 1
    %s120 = scalar_select %p117, %s118, %s119
    %p123 = pneg %p117
    %p124 = scmp.eq.s32.totalorder %s10, 1
    %p125 = por %p123, %p124
    %p126 = scmp.ne.s32.totalorder %s118, %s121
    %p127 = scmp.eq.s32.totalorder %s10, 0
    %p128 = por %p126, %p127
    %p129 = scmp.ne.s32.totalorder %s118, %s121
    %p130 = scmp.eq.s32.totalorder %s15, 1
    %p131 = por %p129, %p130
    %p132 = scmp.ne.s32.totalorder %s121, %s122
    %p133 = scmp.eq.s32.totalorder %s15, 0
    %p134 = por %p132, %p133
    %p135 = scmp.ne.s32.totalorder %s121, %s122
    %p136 = scmp.eq.s32.totalorder %s16, 1
    %p137 = por %p135, %p136
    %p139 = scmp.ne.s32.totalorder %s122, %s138
    %p140 = scmp.eq.s32.totalorder %s16, 0
    %p141 = por %p139, %p140
    %p142 = scmp.le.s32.totalorder 1, %s10
    %p143 = scmp.lt.s32.totalorder %s10, 3
    %p144 = pnand %p142, %p143
    %p145 = pneg %p144
    // Predicated region
    $region9: #{sppf_forward.4} parent=5 // pred_check
      _
    $region10: #{sppf_forward.4} parent=5 // pred_check_branch
      %147 = sbr.rel (%p144) target = $region12
    $region11: #{sppf_forward.4} parent=5 // pred_region
      %s148 = ssub.s32 %s10, 1
    $region12: #{sppf_forward.4} parent=5 // pred_fallthru
      _
    %p149 = scmp.lt.s32.totalorder %s10, 2
    // Predicated region
    $region13: #{sppf_forward.4} parent=5 // pred_check
      %p150 = pneg %p149
    $region14: #{sppf_forward.4} parent=5 // pred_check_branch
      %152 = sbr.rel (%p150) target = $region16
    $region15: #{sppf_forward.4} parent=5 // pred_region
      // Predicated region
      $region17: #{sppf_forward.4} parent=15 // pred_check
        %p153 = pneg %p44
      $region18: #{sppf_forward.4} parent=15 // pred_check_branch
        %155 = sbr.rel (%p153) target = $region20
      $region19: #{sppf_forward.4} parent=15 // pred_region
        %s156 = smul.u32 2, %s18
        %p157 = scmp.lt.s32.totalorder %s17, 1
        %s158 = scalar_select %p157, %s17, 1
        %p159 = scmp.lt.s32.totalorder %s156, 1
        %s160 = scalar_select %p159, %s156, 1
        %s161 = smul.addr %s160, 2
        %s162 = smul.addr %s158, 4
        %s163 = sadd.s32 %s161, %s162
        %s164 = smul.addr %s163, 8
        %s165 = scalar_lea.vmem %s0, %s164
        %s166 = smul.u32 2, %s18
      $region20: #{sppf_forward.4} parent=15 // pred_fallthru
        _
    $region16: #{sppf_forward.4} parent=5 // pred_fallthru
      _
    %p167 = scmp.le.s32.totalorder 1, %s10
    %p168 = scmp.lt.s32.totalorder %s10, 3
    %p169 = pnand %p167, %p168
    %p170 = pneg %p169
    // Predicated region
    $region21: #{sppf_forward.4} parent=5 // pred_check
      _
    $region22: #{sppf_forward.4} parent=5 // pred_check_branch
      %172 = sbr.rel (%p169) target = $region24
    $region23: #{sppf_forward.4} parent=5 // pred_region
      %s173 = ssub.s32 %s10, 1
      %s174 = smul.u32 2, %s20
      %p175 = scmp.lt.s32.totalorder %s19, 1
      %s176 = scalar_select %p175, %s19, 1
      %p177 = scmp.lt.s32.totalorder %s174, 1
      %s178 = scalar_select %p177, %s174, 1
      %s179 = smul.addr %s178, 2
      %s180 = smul.addr %s176, 4
      %s181 = sadd.s32 %s179, %s180
      %s182 = smul.addr %s181, 8
      %s183 = scalar_lea.vmem %s0, %s182
      %p184 = pneg %p50
      %p185 = pneg %p47
      %p186 = pneg %p78
      %p187 = pneg %p75
      %s188 = smul.u32 2, %s20
      %p189 = scmp.lt.s32.totalorder %s19, 1
      %s190 = scalar_select %p189, %s19, 1
      %p191 = scmp.lt.s32.totalorder %s188, 1
      %s192 = scalar_select %p191, %s188, 1
      %s193 = smul.addr %s192, 2
      %s194 = smul.addr %s190, 4
      %s195 = sadd.s32 %s193, %s194
      %s196 = smul.addr %s195, 8
      %s197 = scalar_lea.vmem %s1, %s196
      %p198 = pneg %p106
      %p199 = pneg %p103
      %s200 = smul.u32 2, %s20
      %p201 = scmp.lt.s32.totalorder %s19, 1
      %s202 = scalar_select %p201, %s19, 1
      %p203 = scmp.lt.s32.totalorder %s200, 1
      %s204 = scalar_select %p203, %s200, 1
      %s205 = smul.addr %s204, 2
      %s206 = smul.addr %s202, 4
      %s207 = sadd.s32 %s205, %s206
      %s208 = smul.addr %s207, 8
      %s209 = scalar_lea.vmem %s2, %s208
      %p210 = pneg %p134
      %p211 = pneg %p131
      %s212 = smul.u32 2, %s20
      %p213 = scmp.lt.s32.totalorder %s19, 1
      %s214 = scalar_select %p213, %s19, 1
      %p215 = scmp.lt.s32.totalorder %s212, 1
      %s216 = scalar_select %p215, %s212, 1
      %s217 = smul.addr %s216, 2
      %s218 = smul.addr %s214, 4
      %s219 = sadd.s32 %s217, %s218
      %s220 = smul.addr %s219, 8
      %s221 = scalar_lea.vmem %s3, %s220
      %s222 = smul.u32 2, %s20
      %p223 = scmp.lt.s32.totalorder %s19, 1
      %s224 = scalar_select %p223, %s19, 1
      %p225 = scmp.lt.s32.totalorder %s222, 1
      %s226 = scalar_select %p225, %s222, 1
      %s227 = smul.addr %s226, 2
      %s228 = smul.addr %s224, 4
      %s229 = sadd.s32 %s227, %s228
      %s230 = smul.addr %s229, 8
      %s231 = scalar_lea.vmem %s0, %s230
      %s232 = smul.u32 2, %s20
      %s233 = smul.u32 2, %s20
      %p234 = scmp.lt.s32.totalorder %s19, 1
      %s235 = scalar_select %p234, %s19, 1
      %p236 = scmp.lt.s32.totalorder %s233, 1
      %s237 = scalar_select %p236, %s233, 1
      %s238 = smul.addr %s237, 2
      %s239 = smul.addr %s235, 4
      %s240 = sadd.s32 %s238, %s239
      %s241 = smul.addr %s240, 8
      %s242 = scalar_lea.vmem %s1, %s241
      %s243 = smul.u32 2, %s20
      %s244 = smul.u32 2, %s20
      %p245 = scmp.lt.s32.totalorder %s19, 1
      %s246 = scalar_select %p245, %s19, 1
      %p247 = scmp.lt.s32.totalorder %s244, 1
      %s248 = scalar_select %p247, %s244, 1
      %s249 = smul.addr %s248, 2
      %s250 = smul.addr %s246, 4
      %s251 = sadd.s32 %s249, %s250
      %s252 = smul.addr %s251, 8
      %s253 = scalar_lea.vmem %s2, %s252
      %s254 = smul.u32 2, %s20
      %s255 = smul.u32 2, %s20
      %p256 = scmp.lt.s32.totalorder %s19, 1
      %s257 = scalar_select %p256, %s19, 1
      %p258 = scmp.lt.s32.totalorder %s255, 1
      %s259 = scalar_select %p258, %s255, 1
      %s260 = smul.addr %s259, 2
      %s261 = smul.addr %s257, 4
      %s262 = sadd.s32 %s260, %s261
      %s263 = smul.addr %s262, 8
      %s264 = scalar_lea.vmem %s3, %s263
      %s265 = smul.u32 2, %s20
      %vm266 = vcmask 261120
      %267 = vst.msk [vmem:[#allocation2] sm:$0xff] %vm266, -inf
      %268 = vst.msk [vmem:[#allocation2 + $0x20] sm:$0xff] %vm266, -inf
      %269 = vst.msk [vmem:[#allocation2 + $0x18] sm:$0xff] %vm266, -inf
      %270 = vst.msk [vmem:[#allocation2 + $0x38] sm:$0xff] %vm266, -inf
      %vm271 = vcmask 64512
      %272 = vst.msk [vmem:[#allocation2 + $0x8] sm:$0xff] %vm271, -inf
      %273 = vst.msk [vmem:[#allocation2 + $0x10] sm:$0xff] %vm271, -inf
      %274 = vst.msk [vmem:[#allocation2 + $0x28] sm:$0xff] %vm271, -inf
      %275 = vst.msk [vmem:[#allocation2 + $0x30] sm:$0xff] %vm271, -inf
      %vm276 = vcmask 261312
      %277 = vst.msk [vmem:[#allocation2 + $0x8] sm:$0xff] %vm276, -inf
      %278 = vst.msk [vmem:[#allocation2 + $0x10] sm:$0xff] %vm276, -inf
      %279 = vst.msk [vmem:[#allocation2 + $0x28] sm:$0xff] %vm276, -inf
      %280 = vst.msk [vmem:[#allocation2 + $0x30] sm:$0xff] %vm276, -inf
      %v281 = vld [vmem:[%s231] sm:$0xff]
      %v282 = vld [vmem:[%s231 + $0x8] sm:$0xff]
      %v283 = vld [vmem:[%s231 + $0x10] sm:$0xff]
      %v284 = vld [vmem:[%s231 + $0x18] sm:$0xff]
      %289 = vrot.lane.b32.xlu0 %v281, 8
      %v290 = vpop.permute.xlu0 %289
      %291 = vrot.lane.b32.xlu0 %v282, 8
      %v292 = vpop.permute.xlu0 %291
      %293 = vrot.lane.b32.xlu0 %v283, 8
      %v294 = vpop.permute.xlu0 %293
      %295 = vrot.lane.b32.xlu0 %v284, 8
      %v296 = vpop.permute.xlu0 %295
      %vm301 = vcmask 195648
      %302 = vst.msk [vmem:[#allocation2 + $0x8] sm:$0xff] %vm301, %v290
      %303 = vst.msk [vmem:[#allocation2 + $0x10] sm:$0xff] %vm301, %v292
      %304 = vst.msk [vmem:[#allocation2 + $0x28] sm:$0xff] %vm301, %v294
      %305 = vst.msk [vmem:[#allocation2 + $0x30] sm:$0xff] %vm301, %v296
      %v306 = vld [vmem:[#allocation2] sm:$0xff]
      %v307 = vld [vmem:[#allocation2 + $0x8] sm:$0xff]
      %v308 = vld [vmem:[#allocation2 + $0x10] sm:$0xff]
      %v309 = vld [vmem:[#allocation2 + $0x18] sm:$0xff]
      %v310 = vld [vmem:[#allocation2 + $0x20] sm:$0xff]
      %v311 = vld [vmem:[#allocation2 + $0x28] sm:$0xff]
      %v312 = vld [vmem:[#allocation2 + $0x30] sm:$0xff]
      %v313 = vld [vmem:[#allocation2 + $0x38] sm:$0xff]
      %vm322 = vcmask 1046528
      %v323 = vrot.slane %v306, 1
      %v324 = vrot.slane %v307, 1
      %v325 = vsel %vm322, %v323, %v324
      %v326 = vrot.slane %v308, 1
      %v327 = vsel %vm322, %v324, %v326
      %v328 = vrot.slane %v309, 1
      %v329 = vsel %vm322, %v326, %v328
      %v330 = vrot.slane %v310, 1
      %v331 = vrot.slane %v311, 1
      %v332 = vsel %vm322, %v330, %v331
      %v333 = vrot.slane %v312, 1
      %v334 = vsel %vm322, %v331, %v333
      %v335 = vrot.slane %v313, 1
      %v336 = vsel %vm322, %v333, %v335
      %v345 = vmax.f32 %v306, %v325
      %v346 = vmax.f32 %v307, %v327
      %v347 = vmax.f32 %v308, %v329
      %v348 = vmax.f32 %v309, %v328
      %v349 = vmax.f32 %v310, %v332
      %v350 = vmax.f32 %v311, %v334
      %v351 = vmax.f32 %v312, %v336
      %v352 = vmax.f32 %v313, %v335
      %vm361 = vcmask 1045504
      %v362 = vrot.slane %v345, 2
      %v363 = vrot.slane %v346, 2
      %v364 = vsel %vm361, %v362, %v363
      %v365 = vrot.slane %v347, 2
      %v366 = vsel %vm361, %v363, %v365
      %v367 = vrot.slane %v348, 2
      %v368 = vsel %vm361, %v365, %v367
      %v369 = vrot.slane %v349, 2
      %v370 = vrot.slane %v350, 2
      %v371 = vsel %vm361, %v369, %v370
      %v372 = vrot.slane %v351, 2
      %v373 = vsel %vm361, %v370, %v372
      %v374 = vrot.slane %v352, 2
      %v375 = vsel %vm361, %v372, %v374
      %v384 = vmax.f32 %v345, %v364
      %v385 = vmax.f32 %v346, %v366
      %v386 = vmax.f32 %v347, %v368
      %v387 = vmax.f32 %v348, %v367
      %v388 = vmax.f32 %v349, %v371
      %v389 = vmax.f32 %v350, %v373
      %v390 = vmax.f32 %v351, %v375
      %v391 = vmax.f32 %v352, %v374
      %vm392 = vcmask 1043456
      %v393 = vrot.slane %v306, 4
      %v394 = vrot.slane %v307, 4
      %v395 = vsel %vm392, %v393, %v394
      %v396 = vrot.slane %v308, 4
      %v397 = vsel %vm392, %v394, %v396
      %v398 = vrot.slane %v309, 4
      %v399 = vsel %vm392, %v396, %v398
      %v400 = vrot.slane %v310, 4
      %v401 = vrot.slane %v311, 4
      %v402 = vsel %vm392, %v400, %v401
      %v403 = vrot.slane %v312, 4
      %v404 = vsel %vm392, %v401, %v403
      %v405 = vrot.slane %v313, 4
      %v406 = vsel %vm392, %v403, %v405
      %v415 = vmax.f32 %v384, %v395
      %v416 = vmax.f32 %v385, %v397
      %v417 = vmax.f32 %v386, %v399
      %v418 = vmax.f32 %v387, %v398
      %v419 = vmax.f32 %v388, %v402
      %v420 = vmax.f32 %v389, %v404
      %v421 = vmax.f32 %v390, %v406
      %v422 = vmax.f32 %v391, %v405
      %431 = vrot.lane.b32.xlu0 %v415, 127
      %v432 = vpop.permute.xlu0 %431
      %433 = vrot.lane.b32.xlu0 %v416, 127
      %v434 = vpop.permute.xlu0 %433
      %435 = vrot.lane.b32.xlu0 %v417, 127
      %v436 = vpop.permute.xlu0 %435
      %437 = vrot.lane.b32.xlu0 %v418, 127
      %v438 = vpop.permute.xlu0 %437
      %439 = vrot.lane.b32.xlu0 %v419, 127
      %v440 = vpop.permute.xlu0 %439
      %441 = vrot.lane.b32.xlu0 %v420, 127
      %v442 = vpop.permute.xlu0 %441
      %443 = vrot.lane.b32.xlu0 %v421, 127
      %v444 = vpop.permute.xlu0 %443
      %445 = vrot.lane.b32.xlu0 %v422, 127
      %v446 = vpop.permute.xlu0 %445
      %v455 = vmax.f32 %v415, %v432
      %v456 = vmax.f32 %v416, %v434
      %v457 = vmax.f32 %v417, %v436
      %v458 = vmax.f32 %v418, %v438
      %v459 = vmax.f32 %v419, %v440
      %v460 = vmax.f32 %v420, %v442
      %v461 = vmax.f32 %v421, %v444
      %v462 = vmax.f32 %v422, %v446
      %471 = vrot.lane.b32.xlu0 %v455, 126
      %v472 = vpop.permute.xlu0 %471
      %473 = vrot.lane.b32.xlu0 %v456, 126
      %v474 = vpop.permute.xlu0 %473
      %475 = vrot.lane.b32.xlu0 %v457, 126
      %v476 = vpop.permute.xlu0 %475
      %477 = vrot.lane.b32.xlu0 %v458, 126
      %v478 = vpop.permute.xlu0 %477
      %479 = vrot.lane.b32.xlu0 %v459, 126
      %v480 = vpop.permute.xlu0 %479
      %481 = vrot.lane.b32.xlu0 %v460, 126
      %v482 = vpop.permute.xlu0 %481
      %483 = vrot.lane.b32.xlu0 %v461, 126
      %v484 = vpop.permute.xlu0 %483
      %485 = vrot.lane.b32.xlu0 %v462, 126
      %v486 = vpop.permute.xlu0 %485
      %v495 = vmax.f32 %v455, %v472
      %v496 = vmax.f32 %v456, %v474
      %v497 = vmax.f32 %v457, %v476
      %v498 = vmax.f32 %v458, %v478
      %v499 = vmax.f32 %v459, %v480
      %v500 = vmax.f32 %v460, %v482
      %v501 = vmax.f32 %v461, %v484
      %v502 = vmax.f32 %v462, %v486
      %503 = vrot.lane.b32.xlu0 %v415, 124
      %v504 = vpop.permute.xlu0 %503
      %505 = vrot.lane.b32.xlu0 %v416, 124
      %v506 = vpop.permute.xlu0 %505
      %507 = vrot.lane.b32.xlu0 %v417, 124
      %v508 = vpop.permute.xlu0 %507
      %509 = vrot.lane.b32.xlu0 %v418, 124
      %v510 = vpop.permute.xlu0 %509
      %511 = vrot.lane.b32.xlu0 %v419, 124
      %v512 = vpop.permute.xlu0 %511
      %513 = vrot.lane.b32.xlu0 %v420, 124
      %v514 = vpop.permute.xlu0 %513
      %515 = vrot.lane.b32.xlu0 %v421, 124
      %v516 = vpop.permute.xlu0 %515
      %517 = vrot.lane.b32.xlu0 %v422, 124
      %v518 = vpop.permute.xlu0 %517
      %v527 = vmax.f32 %v495, %v504
      %v528 = vmax.f32 %v496, %v506
      %v529 = vmax.f32 %v497, %v508
      %v530 = vmax.f32 %v498, %v510
      %v531 = vmax.f32 %v499, %v512
      %v532 = vmax.f32 %v500, %v514
      %v533 = vmax.f32 %v501, %v516
      %v534 = vmax.f32 %v502, %v518
      %541 = vrot.lane.b32.xlu0 %v527, 122
      %v542 = vpop.permute.xlu0 %541
      %543 = vrot.lane.b32.xlu0 %v528, 122
      %v544 = vpop.permute.xlu0 %543
      %545 = vrot.lane.b32.xlu0 %v529, 122
      %v546 = vpop.permute.xlu0 %545
      %547 = vrot.lane.b32.xlu0 %v531, 122
      %v548 = vpop.permute.xlu0 %547
      %549 = vrot.lane.b32.xlu0 %v532, 122
      %v550 = vpop.permute.xlu0 %549
      %551 = vrot.lane.b32.xlu0 %v533, 122
      %v552 = vpop.permute.xlu0 %551
      %vm559 = vcmask 130054
      %560 = vst.msk [vmem:[%s242 - $0x6] sm:$0xc0] %vm559, %v542
      %vm561 = vcmask 130048
      %562 = vst.msk [vmem:[%s242 + $0x2] sm:$0xff] %vm561, %v544
      %vm563 = vcmask 128000
      %564 = vst.msk [vmem:[%s242 + $0xa] sm:$0x3f] %vm563, %v546
      %565 = vst.msk [vmem:[%s242 + $0xa] sm:$0xc0] %vm559, %v548
      %566 = vst.msk [vmem:[%s242 + $0x12] sm:$0xff] %vm561, %v550
      %567 = vst.msk [vmem:[%s242 + $0x1a] sm:$0x3f] %vm563, %v552
      %v570 = vrot.slane %v527, 1
      %v571 = vrot.slane %v528, 1
      %v572 = vsel %vm322, %v570, %v571
      %v573 = vrot.slane %v529, 1
      %v574 = vsel %vm322, %v571, %v573
      %v575 = vrot.slane %v530, 1
      %v576 = vsel %vm322, %v573, %v575
      %v577 = vrot.slane %v531, 1
      %v578 = vrot.slane %v532, 1
      %v579 = vsel %vm322, %v577, %v578
      %v580 = vrot.slane %v533, 1
      %v581 = vsel %vm322, %v578, %v580
      %v582 = vrot.slane %v534, 1
      %v583 = vsel %vm322, %v580, %v582
      %v592 = vmax.f32 %v527, %v572
      %v593 = vmax.f32 %v528, %v574
      %v594 = vmax.f32 %v529, %v576
      %v595 = vmax.f32 %v530, %v575
      %v596 = vmax.f32 %v531, %v579
      %v597 = vmax.f32 %v532, %v581
      %v598 = vmax.f32 %v533, %v583
      %v599 = vmax.f32 %v534, %v582
      %v608 = vrot.slane %v592, 2
      %v609 = vrot.slane %v593, 2
      %v610 = vsel %vm361, %v608, %v609
      %v611 = vrot.slane %v594, 2
      %v612 = vsel %vm361, %v609, %v611
      %v613 = vrot.slane %v595, 2
      %v614 = vsel %vm361, %v611, %v613
      %v615 = vrot.slane %v596, 2
      %v616 = vrot.slane %v597, 2
      %v617 = vsel %vm361, %v615, %v616
      %v618 = vrot.slane %v598, 2
      %v619 = vsel %vm361, %v616, %v618
      %v620 = vrot.slane %v599, 2
      %v621 = vsel %vm361, %v618, %v620
      %v628 = vmax.f32 %v592, %v610
      %v629 = vmax.f32 %v593, %v612
      %v630 = vmax.f32 %v594, %v614
      %v631 = vmax.f32 %v596, %v617
      %v632 = vmax.f32 %v597, %v619
      %v633 = vmax.f32 %v598, %v621
      %v634 = vrot.slane %v527, 4
      %v635 = vrot.slane %v528, 4
      %v636 = vsel %vm392, %v634, %v635
      %v637 = vrot.slane %v529, 4
      %v638 = vsel %vm392, %v635, %v637
      %v639 = vrot.slane %v530, 4
      %v640 = vsel %vm392, %v637, %v639
      %v641 = vrot.slane %v531, 4
      %v642 = vrot.slane %v532, 4
      %v643 = vsel %vm392, %v641, %v642
      %v644 = vrot.slane %v533, 4
      %v645 = vsel %vm392, %v642, %v644
      %v646 = vrot.slane %v534, 4
      %v647 = vsel %vm392, %v644, %v646
      %v654 = vmax.f32 %v628, %v636
      %v655 = vmax.f32 %v629, %v638
      %v656 = vmax.f32 %v630, %v640
      %v657 = vmax.f32 %v631, %v643
      %v658 = vmax.f32 %v632, %v645
      %v659 = vmax.f32 %v633, %v647
      %666 = vrot.lane.b32.xlu0 %v654, 127
      %v667 = vpop.permute.xlu0 %666
      %668 = vrot.lane.b32.xlu0 %v655, 127
      %v669 = vpop.permute.xlu0 %668
      %670 = vrot.lane.b32.xlu0 %v656, 127
      %v671 = vpop.permute.xlu0 %670
      %672 = vrot.lane.b32.xlu0 %v657, 127
      %v673 = vpop.permute.xlu0 %672
      %674 = vrot.lane.b32.xlu0 %v658, 127
      %v675 = vpop.permute.xlu0 %674
      %676 = vrot.lane.b32.xlu0 %v659, 127
      %v677 = vpop.permute.xlu0 %676
      %v684 = vmax.f32 %v654, %v667
      %v685 = vmax.f32 %v655, %v669
      %v686 = vmax.f32 %v656, %v671
      %v687 = vmax.f32 %v657, %v673
      %v688 = vmax.f32 %v658, %v675
      %v689 = vmax.f32 %v659, %v677
      %696 = vrot.lane.b32.xlu0 %v684, 126
      %v697 = vpop.permute.xlu0 %696
      %698 = vrot.lane.b32.xlu0 %v685, 126
      %v699 = vpop.permute.xlu0 %698
      %700 = vrot.lane.b32.xlu0 %v686, 126
      %v701 = vpop.permute.xlu0 %700
      %702 = vrot.lane.b32.xlu0 %v687, 126
      %v703 = vpop.permute.xlu0 %702
      %704 = vrot.lane.b32.xlu0 %v688, 126
      %v705 = vpop.permute.xlu0 %704
      %706 = vrot.lane.b32.xlu0 %v689, 126
      %v707 = vpop.permute.xlu0 %706
      %v714 = vmax.f32 %v684, %v697
      %v715 = vmax.f32 %v685, %v699
      %v716 = vmax.f32 %v686, %v701
      %v717 = vmax.f32 %v687, %v703
      %v718 = vmax.f32 %v688, %v705
      %v719 = vmax.f32 %v689, %v707
      %720 = vrot.lane.b32.xlu0 %v654, 124
      %v721 = vpop.permute.xlu0 %720
      %722 = vrot.lane.b32.xlu0 %v655, 124
      %v723 = vpop.permute.xlu0 %722
      %724 = vrot.lane.b32.xlu0 %v656, 124
      %v725 = vpop.permute.xlu0 %724
      %726 = vrot.lane.b32.xlu0 %v657, 124
      %v727 = vpop.permute.xlu0 %726
      %728 = vrot.lane.b32.xlu0 %v658, 124
      %v729 = vpop.permute.xlu0 %728
      %730 = vrot.lane.b32.xlu0 %v659, 124
      %v731 = vpop.permute.xlu0 %730
      %v738 = vmax.f32 %v714, %v721
      %v739 = vmax.f32 %v715, %v723
      %v740 = vmax.f32 %v716, %v725
      %v741 = vmax.f32 %v717, %v727
      %v742 = vmax.f32 %v718, %v729
      %v743 = vmax.f32 %v719, %v731
      %750 = vrot.lane.b32.xlu0 %v738, 124
      %v751 = vpop.permute.xlu0 %750
      %752 = vrot.lane.b32.xlu0 %v739, 124
      %v753 = vpop.permute.xlu0 %752
      %754 = vrot.lane.b32.xlu0 %v740, 124
      %v755 = vpop.permute.xlu0 %754
      %756 = vrot.lane.b32.xlu0 %v741, 124
      %v757 = vpop.permute.xlu0 %756
      %758 = vrot.lane.b32.xlu0 %v742, 124
      %v759 = vpop.permute.xlu0 %758
      %760 = vrot.lane.b32.xlu0 %v743, 124
      %v761 = vpop.permute.xlu0 %760
      %vm768 = vcmask 130052
      %769 = vst.msk [vmem:[%s253 - $0x4] sm:$0xf0] %vm768, %v751
      %770 = vst.msk [vmem:[%s253 + $0x4] sm:$0xff] %vm561, %v753
      %vm771 = vcmask 125952
      %772 = vst.msk [vmem:[%s253 + $0xc] sm:$0xf] %vm771, %v755
      %773 = vst.msk [vmem:[%s253 + $0xc] sm:$0xf0] %vm768, %v757
      %774 = vst.msk [vmem:[%s253 + $0x14] sm:$0xff] %vm561, %v759
      %775 = vst.msk [vmem:[%s253 + $0x1c] sm:$0xf] %vm771, %v761
      %v776 = vrot.slane %v738, 1
      %v777 = vrot.slane %v739, 1
      %v778 = vsel %vm322, %v776, %v777
      %v779 = vrot.slane %v740, 1
      %v780 = vsel %vm322, %v777, %v779
      %v781 = vrot.slane %v741, 1
      %v782 = vrot.slane %v742, 1
      %v783 = vsel %vm322, %v781, %v782
      %v784 = vrot.slane %v743, 1
      %v785 = vsel %vm322, %v782, %v784
      %v792 = vmax.f32 %v738, %v778
      %v793 = vmax.f32 %v739, %v780
      %v794 = vmax.f32 %v740, %v779
      %v795 = vmax.f32 %v741, %v783
      %v796 = vmax.f32 %v742, %v785
      %v797 = vmax.f32 %v743, %v784
      %v804 = vrot.slane %v792, 2
      %v805 = vrot.slane %v793, 2
      %v806 = vsel %vm361, %v804, %v805
      %v807 = vrot.slane %v794, 2
      %v808 = vsel %vm361, %v805, %v807
      %v809 = vrot.slane %v795, 2
      %v810 = vrot.slane %v796, 2
      %v811 = vsel %vm361, %v809, %v810
      %v812 = vrot.slane %v797, 2
      %v813 = vsel %vm361, %v810, %v812
      %v820 = vmax.f32 %v792, %v806
      %v821 = vmax.f32 %v793, %v808
      %v822 = vmax.f32 %v794, %v807
      %v823 = vmax.f32 %v795, %v811
      %v824 = vmax.f32 %v796, %v813
      %v825 = vmax.f32 %v797, %v812
      %v826 = vrot.slane %v738, 4
      %v827 = vrot.slane %v739, 4
      %v828 = vsel %vm392, %v826, %v827
      %v829 = vrot.slane %v740, 4
      %v830 = vsel %vm392, %v827, %v829
      %v831 = vrot.slane %v741, 4
      %v832 = vrot.slane %v742, 4
      %v833 = vsel %vm392, %v831, %v832
      %v834 = vrot.slane %v743, 4
      %v835 = vsel %vm392, %v832, %v834
      %v842 = vmax.f32 %v820, %v828
      %v843 = vmax.f32 %v821, %v830
      %v844 = vmax.f32 %v822, %v829
      %v845 = vmax.f32 %v823, %v833
      %v846 = vmax.f32 %v824, %v835
      %v847 = vmax.f32 %v825, %v834
      %854 = vrot.lane.b32.xlu0 %v842, 127
      %v855 = vpop.permute.xlu0 %854
      %856 = vrot.lane.b32.xlu0 %v843, 127
      %v857 = vpop.permute.xlu0 %856
      %858 = vrot.lane.b32.xlu0 %v844, 127
      %v859 = vpop.permute.xlu0 %858
      %860 = vrot.lane.b32.xlu0 %v845, 127
      %v861 = vpop.permute.xlu0 %860
      %862 = vrot.lane.b32.xlu0 %v846, 127
      %v863 = vpop.permute.xlu0 %862
      %864 = vrot.lane.b32.xlu0 %v847, 127
      %v865 = vpop.permute.xlu0 %864
      %v872 = vmax.f32 %v842, %v855
      %v873 = vmax.f32 %v843, %v857
      %v874 = vmax.f32 %v844, %v859
      %v875 = vmax.f32 %v845, %v861
      %v876 = vmax.f32 %v846, %v863
      %v877 = vmax.f32 %v847, %v865
      %884 = vrot.lane.b32.xlu0 %v872, 126
      %v885 = vpop.permute.xlu0 %884
      %886 = vrot.lane.b32.xlu0 %v873, 126
      %v887 = vpop.permute.xlu0 %886
      %888 = vrot.lane.b32.xlu0 %v874, 126
      %v889 = vpop.permute.xlu0 %888
      %890 = vrot.lane.b32.xlu0 %v875, 126
      %v891 = vpop.permute.xlu0 %890
      %892 = vrot.lane.b32.xlu0 %v876, 126
      %v893 = vpop.permute.xlu0 %892
      %894 = vrot.lane.b32.xlu0 %v877, 126
      %v895 = vpop.permute.xlu0 %894
      %v902 = vmax.f32 %v872, %v885
      %v903 = vmax.f32 %v873, %v887
      %v904 = vmax.f32 %v874, %v889
      %v905 = vmax.f32 %v875, %v891
      %v906 = vmax.f32 %v876, %v893
      %v907 = vmax.f32 %v877, %v895
      %908 = vrot.lane.b32.xlu0 %v842, 124
      %v909 = vpop.permute.xlu0 %908
      %910 = vrot.lane.b32.xlu0 %v843, 124
      %v911 = vpop.permute.xlu0 %910
      %912 = vrot.lane.b32.xlu0 %v844, 124
      %v913 = vpop.permute.xlu0 %912
      %914 = vrot.lane.b32.xlu0 %v845, 124
      %v915 = vpop.permute.xlu0 %914
      %916 = vrot.lane.b32.xlu0 %v846, 124
      %v917 = vpop.permute.xlu0 %916
      %918 = vrot.lane.b32.xlu0 %v847, 124
      %v919 = vpop.permute.xlu0 %918
      %v926 = vmax.f32 %v902, %v909
      %v927 = vmax.f32 %v903, %v911
      %v928 = vmax.f32 %v904, %v913
      %v929 = vmax.f32 %v905, %v915
      %v930 = vmax.f32 %v906, %v917
      %v931 = vmax.f32 %v907, %v919
      %938 = vrot.lane.b32.xlu0 %v926, 126
      %v939 = vpop.permute.xlu0 %938
      %940 = vrot.lane.b32.xlu0 %v927, 126
      %v941 = vpop.permute.xlu0 %940
      %942 = vrot.lane.b32.xlu0 %v928, 126
      %v943 = vpop.permute.xlu0 %942
      %944 = vrot.lane.b32.xlu0 %v929, 126
      %v945 = vpop.permute.xlu0 %944
      %946 = vrot.lane.b32.xlu0 %v930, 126
      %v947 = vpop.permute.xlu0 %946
      %948 = vrot.lane.b32.xlu0 %v931, 126
      %v949 = vpop.permute.xlu0 %948
      %vm956 = vcmask 130050
      %957 = vst.msk [vmem:[%s264 - $0x2] sm:$0xfc] %vm956, %v939
      %958 = vst.msk [vmem:[%s264 + $0x6] sm:$0xff] %vm561, %v941
      %vm959 = vcmask 123904
      %960 = vst.msk [vmem:[%s264 + $0xe] sm:$0x3] %vm959, %v943
      %961 = vst.msk [vmem:[%s264 + $0xe] sm:$0xfc] %vm956, %v945
      %962 = vst.msk [vmem:[%s264 + $0x16] sm:$0xff] %vm561, %v947
      %963 = vst.msk [vmem:[%s264 + $0x1e] sm:$0x3] %vm959, %v949
      %s964 = smul.u32 2, %s20
      %p965 = scmp.lt.s32.totalorder %s19, 1
      %s966 = scalar_select %p965, %s19, 1
      %p967 = scmp.lt.s32.totalorder %s964, 1
      %s968 = scalar_select %p967, %s964, 1
      %s969 = smul.addr %s968, 2
      %s970 = smul.addr %s966, 4
      %s971 = sadd.s32 %s969, %s970
      %s972 = smul.addr %s971, 8
      %s973 = scalar_lea.vmem %s1, %s972
      %s974 = smul.u32 2, %s20
      %p975 = scmp.lt.s32.totalorder %s19, 1
      %s976 = scalar_select %p975, %s19, 1
      %p977 = scmp.lt.s32.totalorder %s974, 1
      %s978 = scalar_select %p977, %s974, 1
      %s979 = smul.addr %s978, 2
      %s980 = smul.addr %s976, 4
      %s981 = sadd.s32 %s979, %s980
      %s982 = smul.addr %s981, 8
      %s983 = scalar_lea.vmem %s2, %s982
      %s984 = smul.u32 2, %s20
      %p985 = scmp.lt.s32.totalorder %s19, 1
      %s986 = scalar_select %p985, %s19, 1
      %p987 = scmp.lt.s32.totalorder %s984, 1
      %s988 = scalar_select %p987, %s984, 1
      %s989 = smul.addr %s988, 2
      %s990 = smul.addr %s986, 4
      %s991 = sadd.s32 %s989, %s990
      %s992 = smul.addr %s991, 8
      %s993 = scalar_lea.vmem %s3, %s992
      // Predicated region
      $region25: #{sppf_forward.4} parent=23 // pred_check
        %p994 = pneg %p75
      $region26: #{sppf_forward.4} parent=23 // pred_check_branch
        %996 = sbr.rel (%p994) target = $region28
      $region27: #{sppf_forward.4} parent=23 // pred_region
        %s997 = smul.u32 2, %s20
      $region28: #{sppf_forward.4} parent=23 // pred_fallthru
        _
      // Predicated region
      $region29: #{sppf_forward.4} parent=23 // pred_check
        %p998 = pneg %p103
      $region30: #{sppf_forward.4} parent=23 // pred_check_branch
        %1000 = sbr.rel (%p998) target = $region32
      $region31: #{sppf_forward.4} parent=23 // pred_region
        %s1001 = smul.u32 2, %s20
      $region32: #{sppf_forward.4} parent=23 // pred_fallthru
        _
      // Predicated region
      $region33: #{sppf_forward.4} parent=23 // pred_check
        %p1002 = pneg %p131
      $region34: #{sppf_forward.4} parent=23 // pred_check_branch
        %1004 = sbr.rel (%p1002) target = $region36
      $region35: #{sppf_forward.4} parent=23 // pred_region
        %s1005 = smul.u32 2, %s20
      $region36: #{sppf_forward.4} parent=23 // pred_fallthru
        _
    $region24: #{sppf_forward.4} parent=5 // pred_fallthru
      _
    %p1006 = scmp.le.s32.totalorder 2, %s10
    // Predicated region
    $region37: #{sppf_forward.4} parent=5 // pred_check
      %p1007 = pneg %p1006
    $region38: #{sppf_forward.4} parent=5 // pred_check_branch
      %1009 = sbr.rel (%p1007) target = $region40
    $region39: #{sppf_forward.4} parent=5 // pred_region
      %s1010 = ssub.s32 %s10, 2
      // Predicated region
      $region41: #{sppf_forward.4} parent=39 // pred_check
        %p1011 = pneg %p81
      $region42: #{sppf_forward.4} parent=39 // pred_check_branch
        %1013 = sbr.rel (%p1011) target = $region44
      $region43: #{sppf_forward.4} parent=39 // pred_region
        %s1014 = smul.u32 2, %s22
        %p1015 = scmp.lt.s32.totalorder %s21, 1
        %s1016 = scalar_select %p1015, %s21, 1
        %p1017 = scmp.lt.s32.totalorder %s1014, 1
        %s1018 = scalar_select %p1017, %s1014, 1
        %s1019 = smul.addr %s1018, 2
        %s1020 = smul.addr %s1016, 4
        %s1021 = sadd.s32 %s1019, %s1020
        %s1022 = smul.addr %s1021, 8
        %s1023 = scalar_lea.vmem %s1, %s1022
      $region44: #{sppf_forward.4} parent=39 // pred_fallthru
        _
      // Predicated region
      $region45: #{sppf_forward.4} parent=39 // pred_check
        %p1024 = pneg %p109
      $region46: #{sppf_forward.4} parent=39 // pred_check_branch
        %1026 = sbr.rel (%p1024) target = $region48
      $region47: #{sppf_forward.4} parent=39 // pred_region
        %s1027 = smul.u32 2, %s22
        %p1028 = scmp.lt.s32.totalorder %s21, 1
        %s1029 = scalar_select %p1028, %s21, 1
        %p1030 = scmp.lt.s32.totalorder %s1027, 1
        %s1031 = scalar_select %p1030, %s1027, 1
        %s1032 = smul.addr %s1031, 2
        %s1033 = smul.addr %s1029, 4
        %s1034 = sadd.s32 %s1032, %s1033
        %s1035 = smul.addr %s1034, 8
        %s1036 = scalar_lea.vmem %s2, %s1035
      $region48: #{sppf_forward.4} parent=39 // pred_fallthru
        _
      // Predicated region
      $region49: #{sppf_forward.4} parent=39 // pred_check
        %p1037 = pneg %p137
      $region50: #{sppf_forward.4} parent=39 // pred_check_branch
        %1039 = sbr.rel (%p1037) target = $region52
      $region51: #{sppf_forward.4} parent=39 // pred_region
        %s1040 = smul.u32 2, %s22
        %p1041 = scmp.lt.s32.totalorder %s21, 1
        %s1042 = scalar_select %p1041, %s21, 1
        %p1043 = scmp.lt.s32.totalorder %s1040, 1
        %s1044 = scalar_select %p1043, %s1040, 1
        %s1045 = smul.addr %s1044, 2
        %s1046 = smul.addr %s1042, 4
        %s1047 = sadd.s32 %s1045, %s1046
        %s1048 = smul.addr %s1047, 8
        %s1049 = scalar_lea.vmem %s3, %s1048
      $region52: #{sppf_forward.4} parent=39 // pred_fallthru
        _
    $region40: #{sppf_forward.4} parent=5 // pred_fallthru
      _
  $region6: #{sppf_forward.4} parent=0 // loop_footer
    %s14 = sadd.s32 1, %s10
  $region7: #{sppf_forward.4} parent=0 // loop_footer_branch
    %9 = sbr.rel target = $region3
  $region8: #{sppf_forward.4} parent=0 // loop_exit
    _

</llo_original>
